<compile_context>
chip_gen: v6e
topology: v6e:2x2x1
jax: 0.10.0
libtpu: 0.0.40
codegen_flags: <defaults>
</compile_context>

<pallas_src>
import functools

import jax
import jax.numpy as jnp
import numpy as np
from jax.experimental import pallas as pl
from jax.experimental.pallas import tpu as pltpu


NEG_SLOPE = -0.189
WBINS = 4


def _kernel(x_ref, w_ref, p_ref, o_ref):
    # x_ref: (N, Cin, HW)   w_ref: (Cout, Cin)   p_ref: (HW, WBINS)
    # o_ref: (N, Cout, WBINS)
    w = w_ref[...]                                                      # (Cout, Cin)
    p = p_ref[...]                                                      # (HW, WBINS)
    n_batch = x_ref.shape[0]                                            # static
    for n in range(n_batch):                                            # static unroll
        xn = x_ref[n]                                                   # (Cin, HW)
        # 1x1 "transposed conv" == channel matmul; y is lane-dense (Cout, HW)
        y = jnp.dot(w, xn, preferred_element_type=jnp.float32)
        # f4 = where(f1 > 0, f1, f1 * -0.189); border cols get zero pool weight
        y = jnp.where(y > 0, y, y * NEG_SLOPE)
        # adaptive_avg_pool2d((1, 4)) as a pooling matmul (crop folded into p)
        o_ref[n] = jnp.dot(y, p, preferred_element_type=jnp.float32)    # (Cout, WBINS)


def _build_pool_mat(H, W):
    """(H*W, WBINS) matrix implementing crop[1:-1,1:-1] + adaptive_avg_pool2d((1,4))."""
    Ho, Wo = H - 2, W - 2
    assert Wo % WBINS == 0, "pool matrix assumes uniform W bins (Wo divisible by 4)"
    binsz = Wo // WBINS
    r = np.arange(H)
    c = np.arange(W)
    valid_r = (r >= 1) & (r <= Ho)                      # interior rows
    valid_c = (c >= 1) & (c <= Wo)                      # interior cols
    bin_of_c = np.clip((c - 1) // binsz, 0, WBINS - 1)  # W-bin of each (uncropped) col
    pm = np.zeros((H * W, WBINS), dtype=np.float32)
    for b in range(WBINS):
        mask = valid_r[:, None] & valid_c[None, :] & (bin_of_c[None, :] == b)
        pm[:, b] = (mask.astype(np.float32) / float(Ho * binsz)).reshape(-1)
    return pm


@jax.jit
def model_forward(x_nchw, weight_tconv):
    """x_nchw: (N, 28, 17, 34) f32; weight_tconv: (28, 6, 1, 1) f32 (torch layout)."""
    N, Cin, H, W = x_nchw.shape
    Cout = weight_tconv.shape[1]
    HW = H * W

    x_flat = x_nchw.reshape(N, Cin, HW)               # free reshape, native NCHW
    w_mat = weight_tconv[:, :, 0, 0].T                # (Cout, Cin), tiny
    pool_mat = jnp.asarray(_build_pool_mat(H, W))     # numpy constant, baked in

    out = pl.pallas_call(
        _kernel,
        out_shape=jax.ShapeDtypeStruct((N, Cout, WBINS), jnp.float32),
        grid_spec=pltpu.PrefetchScalarGridSpec(
            num_scalar_prefetch=0,
            grid=(1,),  # single step: whole problem fits trivially in VMEM
            in_specs=[
                pl.BlockSpec((N, Cin, HW), lambda i: (0, 0, 0)),
                pl.BlockSpec((Cout, Cin), lambda i: (0, 0)),
                pl.BlockSpec((HW, WBINS), lambda i: (0, 0)),
            ],
            out_specs=pl.BlockSpec((N, Cout, WBINS), lambda i: (0, 0, 0)),
        ),
        compiler_params=pltpu.CompilerParams(
            dimension_semantics=("arbitrary",)),
    )(x_flat, w_mat, pool_mat)

    # (N, Cout, WBINS) -> NCHW (N, Cout, 1, WBINS); contiguous reshape, free.
    return out.reshape(N, Cout, 1, WBINS)


def _reference(x_nchw, weight_tconv):
    """Pure-JAX reference of the PyTorch forward."""
    Ho, Wo = x_nchw.shape[2] - 2, x_nchw.shape[3] - 2
    x_crop = x_nchw[:, :, 1:1 + Ho, 1:1 + Wo]
    f1 = jnp.einsum("nchw,co->nohw", x_crop, weight_tconv[:, :, 0, 0])
    f4 = jnp.where(f1 > 0, f1, f1 * NEG_SLOPE)
    f4r = f4.reshape(f4.shape[0], f4.shape[1], Ho, WBINS, Wo // WBINS)
    return jnp.mean(f4r, axis=(2, 4))[:, :, None, :]


if __name__ == "__main__":
    key = jax.random.PRNGKey(0)
    kx, kw = jax.random.split(key)
    # module-implied shapes: x (4, 28, 17, 34), ConvTranspose2d weight (28, 6, 1, 1)
    x = jax.random.normal(kx, (4, 28, 17, 34), dtype=jnp.float32)
    w = jax.random.normal(kw, (28, 6, 1, 1), dtype=jnp.float32) * 0.1

    y = jax.block_until_ready(model_forward(x, w))
    y_ref = jax.block_until_ready(_reference(x, w))

    assert y.shape == (4, 6, 1, 4), y.shape
    assert np.allclose(np.asarray(y), np.asarray(y_ref), rtol=1e-5, atol=1e-5)
    print("KERNEL_OK")
</pallas_src>

<mosaic_0001>
module attributes {stable_mosaic.version = 11 : i64} {
  func.func @_kernel(%arg0: i32, %arg1: memref<4x28x578xf32, #tpu.memory_space<vmem>>, %arg2: memref<6x28xf32, #tpu.memory_space<vmem>>, %arg3: memref<578x4xf32, #tpu.memory_space<vmem>>, %arg4: memref<4x6x4xf32, #tpu.memory_space<vmem>>) attributes {dimension_semantics = [#tpu.dimension_semantics<arbitrary>], iteration_bounds = array<i64: 1>, scalar_prefetch = 0 : i64, scratch_operands = 0 : i64, tpu.core_type = #tpu.core_type<tc>, window_params = [{pipeline_mode = #tpu.pipeline_mode<synchronous>, transform_indices = @transform_0, window_bounds = array<i64: 4, 28, 578>}, {pipeline_mode = #tpu.pipeline_mode<synchronous>, transform_indices = @transform_1, window_bounds = array<i64: 6, 28>}, {pipeline_mode = #tpu.pipeline_mode<synchronous>, transform_indices = @transform_2, window_bounds = array<i64: 578, 4>}, {pipeline_mode = #tpu.pipeline_mode<synchronous>, transform_indices = @transform_3, window_bounds = array<i64: 4, 6, 4>}]} {
    %c0 = arith.constant 0 : index
    %c0_0 = arith.constant 0 : index
    %0 = vector.load %arg2[%c0, %c0_0] : memref<6x28xf32, #tpu.memory_space<vmem>>, vector<6x28xf32>
    %c0_1 = arith.constant 0 : index
    %c0_2 = arith.constant 0 : index
    %1 = vector.load %arg3[%c0_1, %c0_2] : memref<578x4xf32, #tpu.memory_space<vmem>>, vector<578x4xf32>
    %c0_3 = arith.constant 0 : index
    %c0_4 = arith.constant 0 : index
    %c0_5 = arith.constant 0 : index
    %2 = vector.load %arg1[%c0_3, %c0_4, %c0_5] : memref<4x28x578xf32, #tpu.memory_space<vmem>>, vector<1x28x578xf32>
    %3 = vector.shape_cast %2 : vector<1x28x578xf32> to vector<28x578xf32>
    %cst = arith.constant dense<0.000000e+00> : vector<6x578xf32>
    %4 = tpu.matmul %0, %3, %cst {dimension_numbers = #tpu.dot_dimension_numbers<[1], [0], [0], [1], [0, 0, 1, 1], [], []>} : vector<6x28xf32>, vector<28x578xf32>, vector<6x578xf32> -> vector<6x578xf32>
    %cst_6 = arith.constant 0.000000e+00 : f32
    %5 = vector.broadcast %cst_6 : f32 to vector<6x578xf32>
    %6 = arith.cmpf ogt, %4, %5 : vector<6x578xf32>
    %cst_7 = arith.constant -1.890000e-01 : f32
    %7 = vector.broadcast %cst_7 : f32 to vector<6x578xf32>
    %8 = arith.mulf %4, %7 : vector<6x578xf32>
    %9 = arith.select %6, %4, %8 : vector<6x578xi1>, vector<6x578xf32>
    %cst_8 = arith.constant dense<0.000000e+00> : vector<6x4xf32>
    %10 = tpu.matmul %9, %1, %cst_8 {dimension_numbers = #tpu.dot_dimension_numbers<[1], [0], [0], [1], [0, 0, 1, 1], [], []>} : vector<6x578xf32>, vector<578x4xf32>, vector<6x4xf32> -> vector<6x4xf32>
    %c0_9 = arith.constant 0 : index
    %c0_10 = arith.constant 0 : index
    %c0_11 = arith.constant 0 : index
    %11 = vector.load %arg4[%c0_9, %c0_10, %c0_11] : memref<4x6x4xf32, #tpu.memory_space<vmem>>, vector<1x6x4xf32>
    %12 = vector.shape_cast %11 : vector<1x6x4xf32> to vector<6x4xf32>
    %13 = vector.shape_cast %10 : vector<6x4xf32> to vector<1x6x4xf32>
    tpu.vector_store %arg4[%c0_9, %c0_10, %c0_11], %13 {strides = array<i32>} : memref<4x6x4xf32, #tpu.memory_space<vmem>>, vector<1x6x4xf32>,
    %c1 = arith.constant 1 : index
    %c0_12 = arith.constant 0 : index
    %c0_13 = arith.constant 0 : index
    %14 = vector.load %arg1[%c1, %c0_12, %c0_13] : memref<4x28x578xf32, #tpu.memory_space<vmem>>, vector<1x28x578xf32>
    %15 = vector.shape_cast %14 : vector<1x28x578xf32> to vector<28x578xf32>
    %cst_14 = arith.constant dense<0.000000e+00> : vector<6x578xf32>
    %16 = tpu.matmul %0, %15, %cst_14 {dimension_numbers = #tpu.dot_dimension_numbers<[1], [0], [0], [1], [0, 0, 1, 1], [], []>} : vector<6x28xf32>, vector<28x578xf32>, vector<6x578xf32> -> vector<6x578xf32>
    %cst_15 = arith.constant 0.000000e+00 : f32
    %17 = vector.broadcast %cst_15 : f32 to vector<6x578xf32>
    %18 = arith.cmpf ogt, %16, %17 : vector<6x578xf32>
    %cst_16 = arith.constant -1.890000e-01 : f32
    %19 = vector.broadcast %cst_16 : f32 to vector<6x578xf32>
    %20 = arith.mulf %16, %19 : vector<6x578xf32>
    %21 = arith.select %18, %16, %20 : vector<6x578xi1>, vector<6x578xf32>
    %cst_17 = arith.constant dense<0.000000e+00> : vector<6x4xf32>
    %22 = tpu.matmul %21, %1, %cst_17 {dimension_numbers = #tpu.dot_dimension_numbers<[1], [0], [0], [1], [0, 0, 1, 1], [], []>} : vector<6x578xf32>, vector<578x4xf32>, vector<6x4xf32> -> vector<6x4xf32>
    %c1_18 = arith.constant 1 : index
    %c0_19 = arith.constant 0 : index
    %c0_20 = arith.constant 0 : index
    %23 = vector.load %arg4[%c1_18, %c0_19, %c0_20] : memref<4x6x4xf32, #tpu.memory_space<vmem>>, vector<1x6x4xf32>
    %24 = vector.shape_cast %23 : vector<1x6x4xf32> to vector<6x4xf32>
    %25 = vector.shape_cast %22 : vector<6x4xf32> to vector<1x6x4xf32>
    tpu.vector_store %arg4[%c1_18, %c0_19, %c0_20], %25 {strides = array<i32>} : memref<4x6x4xf32, #tpu.memory_space<vmem>>, vector<1x6x4xf32>,
    %c2 = arith.constant 2 : index
    %c0_21 = arith.constant 0 : index
    %c0_22 = arith.constant 0 : index
    %26 = vector.load %arg1[%c2, %c0_21, %c0_22] : memref<4x28x578xf32, #tpu.memory_space<vmem>>, vector<1x28x578xf32>
    %27 = vector.shape_cast %26 : vector<1x28x578xf32> to vector<28x578xf32>
    %cst_23 = arith.constant dense<0.000000e+00> : vector<6x578xf32>
    %28 = tpu.matmul %0, %27, %cst_23 {dimension_numbers = #tpu.dot_dimension_numbers<[1], [0], [0], [1], [0, 0, 1, 1], [], []>} : vector<6x28xf32>, vector<28x578xf32>, vector<6x578xf32> -> vector<6x578xf32>
    %cst_24 = arith.constant 0.000000e+00 : f32
    %29 = vector.broadcast %cst_24 : f32 to vector<6x578xf32>
    %30 = arith.cmpf ogt, %28, %29 : vector<6x578xf32>
    %cst_25 = arith.constant -1.890000e-01 : f32
    %31 = vector.broadcast %cst_25 : f32 to vector<6x578xf32>
    %32 = arith.mulf %28, %31 : vector<6x578xf32>
    %33 = arith.select %30, %28, %32 : vector<6x578xi1>, vector<6x578xf32>
    %cst_26 = arith.constant dense<0.000000e+00> : vector<6x4xf32>
    %34 = tpu.matmul %33, %1, %cst_26 {dimension_numbers = #tpu.dot_dimension_numbers<[1], [0], [0], [1], [0, 0, 1, 1], [], []>} : vector<6x578xf32>, vector<578x4xf32>, vector<6x4xf32> -> vector<6x4xf32>
    %c2_27 = arith.constant 2 : index
    %c0_28 = arith.constant 0 : index
    %c0_29 = arith.constant 0 : index
    %35 = vector.load %arg4[%c2_27, %c0_28, %c0_29] : memref<4x6x4xf32, #tpu.memory_space<vmem>>, vector<1x6x4xf32>
    %36 = vector.shape_cast %35 : vector<1x6x4xf32> to vector<6x4xf32>
    %37 = vector.shape_cast %34 : vector<6x4xf32> to vector<1x6x4xf32>
    tpu.vector_store %arg4[%c2_27, %c0_28, %c0_29], %37 {strides = array<i32>} : memref<4x6x4xf32, #tpu.memory_space<vmem>>, vector<1x6x4xf32>,
    %c3 = arith.constant 3 : index
    %c0_30 = arith.constant 0 : index
    %c0_31 = arith.constant 0 : index
    %38 = vector.load %arg1[%c3, %c0_30, %c0_31] : memref<4x28x578xf32, #tpu.memory_space<vmem>>, vector<1x28x578xf32>
    %39 = vector.shape_cast %38 : vector<1x28x578xf32> to vector<28x578xf32>
    %cst_32 = arith.constant dense<0.000000e+00> : vector<6x578xf32>
    %40 = tpu.matmul %0, %39, %cst_32 {dimension_numbers = #tpu.dot_dimension_numbers<[1], [0], [0], [1], [0, 0, 1, 1], [], []>} : vector<6x28xf32>, vector<28x578xf32>, vector<6x578xf32> -> vector<6x578xf32>
    %cst_33 = arith.constant 0.000000e+00 : f32
    %41 = vector.broadcast %cst_33 : f32 to vector<6x578xf32>
    %42 = arith.cmpf ogt, %40, %41 : vector<6x578xf32>
    %cst_34 = arith.constant -1.890000e-01 : f32
    %43 = vector.broadcast %cst_34 : f32 to vector<6x578xf32>
    %44 = arith.mulf %40, %43 : vector<6x578xf32>
    %45 = arith.select %42, %40, %44 : vector<6x578xi1>, vector<6x578xf32>
    %cst_35 = arith.constant dense<0.000000e+00> : vector<6x4xf32>
    %46 = tpu.matmul %45, %1, %cst_35 {dimension_numbers = #tpu.dot_dimension_numbers<[1], [0], [0], [1], [0, 0, 1, 1], [], []>} : vector<6x578xf32>, vector<578x4xf32>, vector<6x4xf32> -> vector<6x4xf32>
    %c3_36 = arith.constant 3 : index
    %c0_37 = arith.constant 0 : index
    %c0_38 = arith.constant 0 : index
    %47 = vector.load %arg4[%c3_36, %c0_37, %c0_38] : memref<4x6x4xf32, #tpu.memory_space<vmem>>, vector<1x6x4xf32>
    %48 = vector.shape_cast %47 : vector<1x6x4xf32> to vector<6x4xf32>
    %49 = vector.shape_cast %46 : vector<6x4xf32> to vector<1x6x4xf32>
    tpu.vector_store %arg4[%c3_36, %c0_37, %c0_38], %49 {strides = array<i32>} : memref<4x6x4xf32, #tpu.memory_space<vmem>>, vector<1x6x4xf32>,
    return
  }
  func.func @transform_0(%arg0: i32) -> (i32, i32, i32) {
    %c0_i32 = arith.constant 0 : i32
    %c0_i32_0 = arith.constant 0 : i32
    %c0_i32_1 = arith.constant 0 : i32
    %c0_i32_2 = arith.constant 0 : i32
    return %c0_i32, %c0_i32_0, %c0_i32_1 : i32, i32, i32
  }
  func.func @transform_1(%arg0: i32) -> (i32, i32) {
    %c0_i32 = arith.constant 0 : i32
    %c0_i32_0 = arith.constant 0 : i32
    %c0_i32_1 = arith.constant 0 : i32
    return %c0_i32, %c0_i32_0 : i32, i32
  }
  func.func @transform_2(%arg0: i32) -> (i32, i32) {
    %c0_i32 = arith.constant 0 : i32
    %c0_i32_0 = arith.constant 0 : i32
    %c0_i32_1 = arith.constant 0 : i32
    return %c0_i32, %c0_i32_0 : i32, i32
  }
  func.func @transform_3(%arg0: i32) -> (i32, i32, i32) {
    %c0_i32 = arith.constant 0 : i32
    %c0_i32_0 = arith.constant 0 : i32
    %c0_i32_1 = arith.constant 0 : i32
    %c0_i32_2 = arith.constant 0 : i32
    return %c0_i32, %c0_i32_0, %c0_i32_1 : i32, i32, i32
  }
}

</mosaic_0001>

<llo_original>
// kernel: model_forward.1
$region0: #{model_forward.1}
  #allocation0 [shape = 'u32[]', space=smem, size = 0x4, offset = 0x4, fixed_abs, tag = 'smem constant byte address 0x4 - core index']
  #allocation1 [shape = 'u32[144,128]{1,0:T(1,128)}', space=vmem, size = 0x12000, scoped, tag = 'internal scratch']
  %s0 = inlined_call_operand.vmem [shape: f32[4,28,578], index: 0, kind: input, shape index: {}]
  %s1 = inlined_call_operand.vmem [shape: f32[6,28], index: 1, kind: input, shape index: {}]
  %s2 = inlined_call_operand.vmem [shape: f32[578,4], index: 2, kind: input, shape index: {}]
  %s3 = inlined_call_operand.vmem [shape: f32[4,6,4], index: 3, kind: output, shape index: {}]
  %s4 = sld [smem:[#allocation0]]
  $region22: #{model_forward.1} parent=0
    _
  %s6 = ssub.s32 1, %s4
  %s7 = scalar_select 0, %s6, %s4
  // Predicated region
  $region2: #{model_forward.1} parent=0 // pred_check
    _
  $region3: #{model_forward.1} parent=0 // pred_check_branch
    %9 = sbr.rel (0) target = $region5
  $region4: #{model_forward.1} parent=0 // pred_region
    _
  $region5: #{model_forward.1} parent=0 // pred_fallthru
    _
  // Predicated region
  $region6: #{model_forward.1} parent=0 // pred_check
    _
  $region7: #{model_forward.1} parent=0 // pred_check_branch
    %11 = sbr.rel (0) target = $region9
  $region8: #{model_forward.1} parent=0 // pred_region
    _
  $region9: #{model_forward.1} parent=0 // pred_fallthru
    _
  // Predicated region
  $region10: #{model_forward.1} parent=0 // pred_check
    _
  $region11: #{model_forward.1} parent=0 // pred_check_branch
    %13 = sbr.rel (0) target = $region13
  $region12: #{model_forward.1} parent=0 // pred_region
    _
  $region13: #{model_forward.1} parent=0 // pred_fallthru
    _
  %v14 = vld [vmem:[%s1] sm:$0x3f]
  %v15 = vld [vmem:[%s2] sm:$0xff]
  %v16 = vld [vmem:[%s2 + $0x8] sm:$0xff]
  %v17 = vld [vmem:[%s2 + $0x10] sm:$0xff]
  %v18 = vld [vmem:[%s2 + $0x18] sm:$0xff]
  %v19 = vld [vmem:[%s2 + $0x20] sm:$0xff]
  %v20 = vld [vmem:[%s2 + $0x28] sm:$0xff]
  %v21 = vld [vmem:[%s2 + $0x30] sm:$0xff]
  %v22 = vld [vmem:[%s2 + $0x38] sm:$0xff]
  %v23 = vld [vmem:[%s2 + $0x40] sm:$0xff]
  %v24 = vld [vmem:[%s2 + $0x48] sm:$0xff]
  %v25 = vld [vmem:[%s2 + $0x50] sm:$0xff]
  %v26 = vld [vmem:[%s2 + $0x58] sm:$0xff]
  %v27 = vld [vmem:[%s2 + $0x60] sm:$0xff]
  %v28 = vld [vmem:[%s2 + $0x68] sm:$0xff]
  %v29 = vld [vmem:[%s2 + $0x70] sm:$0xff]
  %v30 = vld [vmem:[%s2 + $0x78] sm:$0xff]
  %v31 = vld [vmem:[%s2 + $0x80] sm:$0xff]
  %v32 = vld [vmem:[%s2 + $0x88] sm:$0xff]
  %v33 = vld [vmem:[%s2 + $0x90] sm:$0xff]
  %v34 = vld [vmem:[%s2 + $0x98] sm:$0xff]
  %v35 = vld [vmem:[%s2 + $0xa0] sm:$0xff]
  %v36 = vld [vmem:[%s2 + $0xa8] sm:$0xff]
  %v37 = vld [vmem:[%s2 + $0xb0] sm:$0xff]
  %v38 = vld [vmem:[%s2 + $0xb8] sm:$0xff]
  %v39 = vld [vmem:[%s2 + $0xc0] sm:$0xff]
  %v40 = vld [vmem:[%s2 + $0xc8] sm:$0xff]
  %v41 = vld [vmem:[%s2 + $0xd0] sm:$0xff]
  %v42 = vld [vmem:[%s2 + $0xd8] sm:$0xff]
  %v43 = vld [vmem:[%s2 + $0xe0] sm:$0xff]
  %v44 = vld [vmem:[%s2 + $0xe8] sm:$0xff]
  %v45 = vld [vmem:[%s2 + $0xf0] sm:$0xff]
  %v46 = vld [vmem:[%s2 + $0xf8] sm:$0xff]
  %v47 = vld [vmem:[%s2 + $0x100] sm:$0xff]
  %v48 = vld [vmem:[%s2 + $0x108] sm:$0xff]
  %v49 = vld [vmem:[%s2 + $0x110] sm:$0xff]
  %v50 = vld [vmem:[%s2 + $0x118] sm:$0xff]
  %v51 = vld [vmem:[%s2 + $0x120] sm:$0xff]
  %v52 = vld [vmem:[%s2 + $0x128] sm:$0xff]
  %v53 = vld [vmem:[%s2 + $0x130] sm:$0xff]
  %v54 = vld [vmem:[%s2 + $0x138] sm:$0xff]
  %v55 = vld [vmem:[%s2 + $0x140] sm:$0xff]
  %v56 = vld [vmem:[%s2 + $0x148] sm:$0xff]
  %v57 = vld [vmem:[%s2 + $0x150] sm:$0xff]
  %v58 = vld [vmem:[%s2 + $0x158] sm:$0xff]
  %v59 = vld [vmem:[%s2 + $0x160] sm:$0xff]
  %v60 = vld [vmem:[%s2 + $0x168] sm:$0xff]
  %v61 = vld [vmem:[%s2 + $0x170] sm:$0xff]
  %v62 = vld [vmem:[%s2 + $0x178] sm:$0xff]
  %v63 = vld [vmem:[%s2 + $0x180] sm:$0xff]
  %v64 = vld [vmem:[%s2 + $0x188] sm:$0xff]
  %v65 = vld [vmem:[%s2 + $0x190] sm:$0xff]
  %v66 = vld [vmem:[%s2 + $0x198] sm:$0xff]
  %v67 = vld [vmem:[%s2 + $0x1a0] sm:$0xff]
  %v68 = vld [vmem:[%s2 + $0x1a8] sm:$0xff]
  %v69 = vld [vmem:[%s2 + $0x1b0] sm:$0xff]
  %v70 = vld [vmem:[%s2 + $0x1b8] sm:$0xff]
  %v71 = vld [vmem:[%s2 + $0x1c0] sm:$0xff]
  %v72 = vld [vmem:[%s2 + $0x1c8] sm:$0xff]
  %v73 = vld [vmem:[%s2 + $0x1d0] sm:$0xff]
  %v74 = vld [vmem:[%s2 + $0x1d8] sm:$0xff]
  %v75 = vld [vmem:[%s2 + $0x1e0] sm:$0xff]
  %v76 = vld [vmem:[%s2 + $0x1e8] sm:$0xff]
  %v77 = vld [vmem:[%s2 + $0x1f0] sm:$0xff]
  %v78 = vld [vmem:[%s2 + $0x1f8] sm:$0xff]
  %v79 = vld [vmem:[%s2 + $0x200] sm:$0xff]
  %v80 = vld [vmem:[%s2 + $0x208] sm:$0xff]
  %v81 = vld [vmem:[%s2 + $0x210] sm:$0xff]
  %v82 = vld [vmem:[%s2 + $0x218] sm:$0xff]
  %v83 = vld [vmem:[%s2 + $0x220] sm:$0xff]
  %v84 = vld [vmem:[%s2 + $0x228] sm:$0xff]
  %v85 = vld [vmem:[%s2 + $0x230] sm:$0xff]
  %v86 = vld [vmem:[%s2 + $0x238] sm:$0xff]
  %v87 = vld [vmem:[%s2 + $0x240] sm:$0x3]
  %v88 = vld [vmem:[%s0] sm:$0xff]
  %v89 = vld [vmem:[%s0 + $0x8] sm:$0xff]
  %v90 = vld [vmem:[%s0 + $0x10] sm:$0xff]
  %v91 = vld [vmem:[%s0 + $0x18] sm:$0xff]
  %v92 = vld [vmem:[%s0 + $0x20] sm:$0xff]
  %v93 = vld [vmem:[%s0 + $0x28] sm:$0xff]
  %v94 = vld [vmem:[%s0 + $0x30] sm:$0xff]
  %v95 = vld [vmem:[%s0 + $0x38] sm:$0xff]
  %v96 = vld [vmem:[%s0 + $0x40] sm:$0xff]
  %v97 = vld [vmem:[%s0 + $0x48] sm:$0xff]
  %v98 = vld [vmem:[%s0 + $0x50] sm:$0xff]
  %v99 = vld [vmem:[%s0 + $0x58] sm:$0xff]
  %v100 = vld [vmem:[%s0 + $0x60] sm:$0xff]
  %v101 = vld [vmem:[%s0 + $0x68] sm:$0xff]
  %v102 = vld [vmem:[%s0 + $0x70] sm:$0xff]
  %v103 = vld [vmem:[%s0 + $0x78] sm:$0xf]
  %v104 = vld [vmem:[%s0 + $0x80] sm:$0xf]
  %v105 = vld [vmem:[%s0 + $0x88] sm:$0xf]
  %v106 = vld [vmem:[%s0 + $0x90] sm:$0xf]
  %v107 = vld [vmem:[%s0 + $0x98] sm:$0xf]
  %vm108 = vcmask 228352
  %v110 = vsel %vm108, %v14, 0
  %vm112 = vcmask 1043456
  %v114 = vsel %vm112, %v103, 0
  %v117 = vsel %vm112, %v104, 0
  %v120 = vsel %vm112, %v105, 0
  %v123 = vsel %vm112, %v106, 0
  %v126 = vsel %vm112, %v107, 0
  %128 = vmatprep.subr.mxu0 0.0
  %129 = vmatpush1.msra.mxu0 0.0
  %130 = vmatprep.subr.mxu0 0.0
  %131 = vmatpush1.msra.mxu0 0.0
  %132 = vmatprep.subr.mxu0 0.0
  %133 = vmatpush1.msra.mxu0 0.0
  %134 = vmatprep.subr.mxu0 0.0
  %135 = vmatpush1.msra.mxu0 0.0
  %136 = vmatprep.subr.mxu0 0.0
  %137 = vmatpush1.msra.mxu0 0.0
  %138 = vmatprep.subr.mxu0 0.0
  %139 = vmatpush1.msra.mxu0 0.0
  %140 = vmatprep.subr.mxu0 0.0
  %141 = vmatpush1.msra.mxu0 0.0
  %142 = vmatprep.subr.mxu0 0.0
  %143 = vmatpush1.msra.mxu0 0.0
  %144 = vmatprep.subr.mxu0 0.0
  %145 = vmatpush1.msra.mxu0 0.0
  %146 = vmatprep.subr.mxu0 0.0
  %147 = vmatpush1.msra.mxu0 0.0
  %148 = vmatprep.subr.mxu0 0.0
  %149 = vmatpush1.msra.mxu0 0.0
  %150 = vmatprep.subr.mxu0 0.0
  %151 = vmatpush1.msra.mxu0 0.0
  %152 = vmatprep.subr.mxu0 %v117
  %153 = vmatpush1.msra.mxu0 %v114
  %154 = vmatprep.subr.mxu0 %v99
  %155 = vmatpush1.msra.mxu0 %v98
  %156 = vmatprep.subr.mxu0 %v94
  %157 = vmatpush1.msra.mxu0 %v93
  %158 = vmatprep.subr.mxu0 %v89
  %159 = vmatpush1.msra.mxu0 %v88
  %160 = vmatprep.subr.mxu0 0.0
  %161 = vmatpush2.msra.mxu0 0.0
  %162 = vmatprep.subr.mxu0 0.0
  %163 = vmatpush2.msra.mxu0 0.0
  %164 = vmatprep.subr.mxu0 0.0
  %165 = vmatpush2.msra.mxu0 0.0
  %166 = vmatprep.subr.mxu0 0.0
  %167 = vmatpush2.msra.mxu0 0.0
  %168 = vmatprep.subr.mxu0 0.0
  %169 = vmatpush2.msra.mxu0 0.0
  %170 = vmatprep.subr.mxu0 0.0
  %171 = vmatpush2.msra.mxu0 0.0
  %172 = vmatprep.subr.mxu0 0.0
  %173 = vmatpush2.msra.mxu0 0.0
  %174 = vmatprep.subr.mxu0 0.0
  %175 = vmatpush2.msra.mxu0 0.0
  %176 = vmatprep.subr.mxu0 0.0
  %177 = vmatpush2.msra.mxu0 0.0
  %178 = vmatprep.subr.mxu0 0.0
  %179 = vmatpush2.msra.mxu0 0.0
  %180 = vmatprep.subr.mxu0 0.0
  %181 = vmatpush2.msra.mxu0 0.0
  %182 = vmatprep.subr.mxu0 0.0
  %183 = vmatpush2.msra.mxu0 0.0
  %184 = vmatprep.subr.mxu0 0.0
  %185 = vmatpush2.msra.mxu0 0.0
  %186 = vmatprep.subr.mxu0 0.0
  %187 = vmatpush2.msra.mxu0 0.0
  %188 = vmatprep.subr.mxu0 0.0
  %189 = vmatpush2.msra.mxu0 0.0
  %190 = vmatprep.subr.mxu0 0.0
  %191 = vmatpush2.msra.mxu0 0.0
  %192 = vmatprep.mubr.f32.mxu0 0.0
  %193 = vmatmul.mubr.f32.gmra.mxu0 %v110
  %v194 = vpop.f32.mrf.mxu0
  %v195 = vadd.f32 0.0, %v194
  %v196 = vpop.f32.mrf.mxu0
  %v197 = vadd.f32 0.0, %v196
  %198 = vdwg.mxu0
  %199 = vmatprep.subr.mxu0 0.0
  %200 = vmatpush1.msra.mxu0 0.0
  %201 = vmatprep.subr.mxu0 0.0
  %202 = vmatpush1.msra.mxu0 0.0
  %203 = vmatprep.subr.mxu0 0.0
  %204 = vmatpush1.msra.mxu0 0.0
  %205 = vmatprep.subr.mxu0 0.0
  %206 = vmatpush1.msra.mxu0 0.0
  %207 = vmatprep.subr.mxu0 0.0
  %208 = vmatpush1.msra.mxu0 0.0
  %209 = vmatprep.subr.mxu0 0.0
  %210 = vmatpush1.msra.mxu0 0.0
  %211 = vmatprep.subr.mxu0 0.0
  %212 = vmatpush1.msra.mxu0 0.0
  %213 = vmatprep.subr.mxu0 0.0
  %214 = vmatpush1.msra.mxu0 0.0
  %215 = vmatprep.subr.mxu0 0.0
  %216 = vmatpush1.msra.mxu0 0.0
  %217 = vmatprep.subr.mxu0 0.0
  %218 = vmatpush1.msra.mxu0 0.0
  %219 = vmatprep.subr.mxu0 0.0
  %220 = vmatpush1.msra.mxu0 0.0
  %221 = vmatprep.subr.mxu0 0.0
  %222 = vmatpush1.msra.mxu0 0.0
  %223 = vmatprep.subr.mxu0 %v123
  %224 = vmatpush1.msra.mxu0 %v120
  %225 = vmatprep.subr.mxu0 %v101
  %226 = vmatpush1.msra.mxu0 %v100
  %227 = vmatprep.subr.mxu0 %v96
  %228 = vmatpush1.msra.mxu0 %v95
  %229 = vmatprep.subr.mxu0 %v91
  %230 = vmatpush1.msra.mxu0 %v90
  %231 = vmatprep.subr.mxu0 0.0
  %232 = vmatpush2.msra.mxu0 0.0
  %233 = vmatprep.subr.mxu0 0.0
  %234 = vmatpush2.msra.mxu0 0.0
  %235 = vmatprep.subr.mxu0 0.0
  %236 = vmatpush2.msra.mxu0 0.0
  %237 = vmatprep.subr.mxu0 0.0
  %238 = vmatpush2.msra.mxu0 0.0
  %239 = vmatprep.subr.mxu0 0.0
  %240 = vmatpush2.msra.mxu0 0.0
  %241 = vmatprep.subr.mxu0 0.0
  %242 = vmatpush2.msra.mxu0 0.0
  %243 = vmatprep.subr.mxu0 0.0
  %244 = vmatpush2.msra.mxu0 0.0
  %245 = vmatprep.subr.mxu0 0.0
  %246 = vmatpush2.msra.mxu0 0.0
  %247 = vmatprep.subr.mxu0 0.0
  %248 = vmatpush2.msra.mxu0 0.0
  %249 = vmatprep.subr.mxu0 0.0
  %250 = vmatpush2.msra.mxu0 0.0
  %251 = vmatprep.subr.mxu0 0.0
  %252 = vmatpush2.msra.mxu0 0.0
  %253 = vmatprep.subr.mxu0 0.0
  %254 = vmatpush2.msra.mxu0 0.0
  %255 = vmatprep.subr.mxu0 0.0
  %256 = vmatpush2.msra.mxu0 0.0
  %257 = vmatprep.subr.mxu0 0.0
  %258 = vmatpush2.msra.mxu0 0.0
  %259 = vmatprep.subr.mxu0 0.0
  %260 = vmatpush2.msra.mxu0 0.0
  %261 = vmatprep.subr.mxu0 0.0
  %262 = vmatpush2.msra.mxu0 0.0
  %263 = vmatprep.mubr.f32.mxu0 0.0
  %264 = vmatmul.mubr.f32.gmra.mxu0 %v110
  %v265 = vpop.f32.mrf.mxu0
  %v266 = vadd.f32 0.0, %v265
  %v267 = vpop.f32.mrf.mxu0
  %v268 = vadd.f32 0.0, %v267
  %269 = vdwg.mxu0
  %270 = vmatprep.subr.mxu0 0.0
  %271 = vmatpush1.msra.mxu0 0.0
  %272 = vmatprep.subr.mxu0 0.0
  %273 = vmatpush1.msra.mxu0 0.0
  %274 = vmatprep.subr.mxu0 0.0
  %275 = vmatpush1.msra.mxu0 0.0
  %276 = vmatprep.subr.mxu0 0.0
  %277 = vmatpush1.msra.mxu0 0.0
  %278 = vmatprep.subr.mxu0 0.0
  %279 = vmatpush1.msra.mxu0 0.0
  %280 = vmatprep.subr.mxu0 0.0
  %281 = vmatpush1.msra.mxu0 0.0
  %282 = vmatprep.subr.mxu0 0.0
  %283 = vmatpush1.msra.mxu0 0.0
  %284 = vmatprep.subr.mxu0 0.0
  %285 = vmatpush1.msra.mxu0 0.0
  %286 = vmatprep.subr.mxu0 0.0
  %287 = vmatpush1.msra.mxu0 0.0
  %288 = vmatprep.subr.mxu0 0.0
  %289 = vmatpush1.msra.mxu0 0.0
  %290 = vmatprep.subr.mxu0 0.0
  %291 = vmatpush1.msra.mxu0 0.0
  %292 = vmatprep.subr.mxu0 0.0
  %293 = vmatpush1.msra.mxu0 0.0
  %294 = vmatprep.subr.mxu0 0.0
  %295 = vmatpush1.msra.mxu0 %v126
  %296 = vmatprep.subr.mxu0 0.0
  %297 = vmatpush1.msra.mxu0 %v102
  %298 = vmatprep.subr.mxu0 0.0
  %299 = vmatpush1.msra.mxu0 %v97
  %300 = vmatprep.subr.mxu0 0.0
  %301 = vmatpush1.msra.mxu0 %v92
  %302 = vmatprep.subr.mxu0 0.0
  %303 = vmatpush2.msra.mxu0 0.0
  %304 = vmatprep.subr.mxu0 0.0
  %305 = vmatpush2.msra.mxu0 0.0
  %306 = vmatprep.subr.mxu0 0.0
  %307 = vmatpush2.msra.mxu0 0.0
  %308 = vmatprep.subr.mxu0 0.0
  %309 = vmatpush2.msra.mxu0 0.0
  %310 = vmatprep.subr.mxu0 0.0
  %311 = vmatpush2.msra.mxu0 0.0
  %312 = vmatprep.subr.mxu0 0.0
  %313 = vmatpush2.msra.mxu0 0.0
  %314 = vmatprep.subr.mxu0 0.0
  %315 = vmatpush2.msra.mxu0 0.0
  %316 = vmatprep.subr.mxu0 0.0
  %317 = vmatpush2.msra.mxu0 0.0
  %318 = vmatprep.subr.mxu0 0.0
  %319 = vmatpush2.msra.mxu0 0.0
  %320 = vmatprep.subr.mxu0 0.0
  %321 = vmatpush2.msra.mxu0 0.0
  %322 = vmatprep.subr.mxu0 0.0
  %323 = vmatpush2.msra.mxu0 0.0
  %324 = vmatprep.subr.mxu0 0.0
  %325 = vmatpush2.msra.mxu0 0.0
  %326 = vmatprep.subr.mxu0 0.0
  %327 = vmatpush2.msra.mxu0 0.0
  %328 = vmatprep.subr.mxu0 0.0
  %329 = vmatpush2.msra.mxu0 0.0
  %330 = vmatprep.subr.mxu0 0.0
  %331 = vmatpush2.msra.mxu0 0.0
  %332 = vmatprep.subr.mxu0 0.0
  %333 = vmatpush2.msra.mxu0 0.0
  %334 = vmatprep.mubr.f32.mxu0 0.0
  %335 = vmatmul.mubr.f32.gmra.mxu0 %v110
  %v336 = vpop.f32.mrf.mxu0
  %v337 = vadd.f32 0.0, %v336
  %v338 = vpop.f32.mrf.mxu0
  %339 = vdwg.mxu0
  %vm340 = vcmp.gt.f32.partialorder %v195, 0.0
  %vm341 = vcmp.gt.f32.partialorder %v197, 0.0
  %vm342 = vcmp.gt.f32.partialorder %v266, 0.0
  %vm343 = vcmp.gt.f32.partialorder %v268, 0.0
  %vm344 = vcmp.gt.f32.partialorder %v337, 0.0
  %v345 = vmul.f32 %v195, -0.189
  %v346 = vmul.f32 %v197, -0.189
  %v347 = vmul.f32 %v266, -0.189
  %v348 = vmul.f32 %v268, -0.189
  %v349 = vmul.f32 %v337, -0.189
  %v350 = vsel %vm340, %v195, %v345
  %v351 = vsel %vm341, %v197, %v346
  %v352 = vsel %vm342, %v266, %v347
  %v353 = vsel %vm343, %v268, %v348
  %v354 = vsel %vm344, %v337, %v349
  %vm355 = vcmask 539648
  %v357 = vsel %vm355, %v354, 0
  %vm359 = vcmask 1041408
  %v361 = vsel %vm359, %v87, 0
  %363 = vmatprep.subr.mxu0 0.0
  %364 = vmatpush1.msra.mxu0 %v30
  %365 = vmatprep.subr.mxu0 0.0
  %366 = vmatpush1.msra.mxu0 %v29
  %367 = vmatprep.subr.mxu0 0.0
  %368 = vmatpush1.msra.mxu0 %v28
  %369 = vmatprep.subr.mxu0 0.0
  %370 = vmatpush1.msra.mxu0 %v27
  %371 = vmatprep.subr.mxu0 0.0
  %372 = vmatpush1.msra.mxu0 %v26
  %373 = vmatprep.subr.mxu0 0.0
  %374 = vmatpush1.msra.mxu0 %v25
  %375 = vmatprep.subr.mxu0 0.0
  %376 = vmatpush1.msra.mxu0 %v24
  %377 = vmatprep.subr.mxu0 0.0
  %378 = vmatpush1.msra.mxu0 %v23
  %379 = vmatprep.subr.mxu0 0.0
  %380 = vmatpush1.msra.mxu0 %v22
  %381 = vmatprep.subr.mxu0 0.0
  %382 = vmatpush1.msra.mxu0 %v21
  %383 = vmatprep.subr.mxu0 0.0
  %384 = vmatpush1.msra.mxu0 %v20
  %385 = vmatprep.subr.mxu0 0.0
  %386 = vmatpush1.msra.mxu0 %v19
  %387 = vmatprep.subr.mxu0 0.0
  %388 = vmatpush1.msra.mxu0 %v18
  %389 = vmatprep.subr.mxu0 0.0
  %390 = vmatpush1.msra.mxu0 %v17
  %391 = vmatprep.subr.mxu0 0.0
  %392 = vmatpush1.msra.mxu0 %v16
  %393 = vmatprep.subr.mxu0 0.0
  %394 = vmatpush1.msra.mxu0 %v15
  %395 = vmatprep.subr.mxu0 0.0
  %396 = vmatpush2.msra.mxu0 %v46
  %397 = vmatprep.subr.mxu0 0.0
  %398 = vmatpush2.msra.mxu0 %v45
  %399 = vmatprep.subr.mxu0 0.0
  %400 = vmatpush2.msra.mxu0 %v44
  %401 = vmatprep.subr.mxu0 0.0
  %402 = vmatpush2.msra.mxu0 %v43
  %403 = vmatprep.subr.mxu0 0.0
  %404 = vmatpush2.msra.mxu0 %v42
  %405 = vmatprep.subr.mxu0 0.0
  %406 = vmatpush2.msra.mxu0 %v41
  %407 = vmatprep.subr.mxu0 0.0
  %408 = vmatpush2.msra.mxu0 %v40
  %409 = vmatprep.subr.mxu0 0.0
  %410 = vmatpush2.msra.mxu0 %v39
  %411 = vmatprep.subr.mxu0 0.0
  %412 = vmatpush2.msra.mxu0 %v38
  %413 = vmatprep.subr.mxu0 0.0
  %414 = vmatpush2.msra.mxu0 %v37
  %415 = vmatprep.subr.mxu0 0.0
  %416 = vmatpush2.msra.mxu0 %v36
  %417 = vmatprep.subr.mxu0 0.0
  %418 = vmatpush2.msra.mxu0 %v35
  %419 = vmatprep.subr.mxu0 0.0
  %420 = vmatpush2.msra.mxu0 %v34
  %421 = vmatprep.subr.mxu0 0.0
  %422 = vmatpush2.msra.mxu0 %v33
  %423 = vmatprep.subr.mxu0 0.0
  %424 = vmatpush2.msra.mxu0 %v32
  %425 = vmatprep.subr.mxu0 0.0
  %426 = vmatpush2.msra.mxu0 %v31
  %427 = vmatprep.mubr.f32.mxu0 %v351
  %428 = vmatmul.mubr.f32.gmra.mxu0 %v350
  %v429 = vpop.f32.mrf.mxu0
  %v430 = vadd.f32 0.0, %v429
  %v431 = vpop.f32.mrf.mxu0
  %432 = vdwg.mxu0
  %433 = vmatprep.subr.mxu0 0.0
  %434 = vmatpush1.msra.mxu0 %v62
  %435 = vmatprep.subr.mxu0 0.0
  %436 = vmatpush1.msra.mxu0 %v61
  %437 = vmatprep.subr.mxu0 0.0
  %438 = vmatpush1.msra.mxu0 %v60
  %439 = vmatprep.subr.mxu0 0.0
  %440 = vmatpush1.msra.mxu0 %v59
  %441 = vmatprep.subr.mxu0 0.0
  %442 = vmatpush1.msra.mxu0 %v58
  %443 = vmatprep.subr.mxu0 0.0
  %444 = vmatpush1.msra.mxu0 %v57
  %445 = vmatprep.subr.mxu0 0.0
  %446 = vmatpush1.msra.mxu0 %v56
  %447 = vmatprep.subr.mxu0 0.0
  %448 = vmatpush1.msra.mxu0 %v55
  %449 = vmatprep.subr.mxu0 0.0
  %450 = vmatpush1.msra.mxu0 %v54
  %451 = vmatprep.subr.mxu0 0.0
  %452 = vmatpush1.msra.mxu0 %v53
  %453 = vmatprep.subr.mxu0 0.0
  %454 = vmatpush1.msra.mxu0 %v52
  %455 = vmatprep.subr.mxu0 0.0
  %456 = vmatpush1.msra.mxu0 %v51
  %457 = vmatprep.subr.mxu0 0.0
  %458 = vmatpush1.msra.mxu0 %v50
  %459 = vmatprep.subr.mxu0 0.0
  %460 = vmatpush1.msra.mxu0 %v49
  %461 = vmatprep.subr.mxu0 0.0
  %462 = vmatpush1.msra.mxu0 %v48
  %463 = vmatprep.subr.mxu0 0.0
  %464 = vmatpush1.msra.mxu0 %v47
  %465 = vmatprep.subr.mxu0 0.0
  %466 = vmatpush2.msra.mxu0 %v78
  %467 = vmatprep.subr.mxu0 0.0
  %468 = vmatpush2.msra.mxu0 %v77
  %469 = vmatprep.subr.mxu0 0.0
  %470 = vmatpush2.msra.mxu0 %v76
  %471 = vmatprep.subr.mxu0 0.0
  %472 = vmatpush2.msra.mxu0 %v75
  %473 = vmatprep.subr.mxu0 0.0
  %474 = vmatpush2.msra.mxu0 %v74
  %475 = vmatprep.subr.mxu0 0.0
  %476 = vmatpush2.msra.mxu0 %v73
  %477 = vmatprep.subr.mxu0 0.0
  %478 = vmatpush2.msra.mxu0 %v72
  %479 = vmatprep.subr.mxu0 0.0
  %480 = vmatpush2.msra.mxu0 %v71
  %481 = vmatprep.subr.mxu0 0.0
  %482 = vmatpush2.msra.mxu0 %v70
  %483 = vmatprep.subr.mxu0 0.0
  %484 = vmatpush2.msra.mxu0 %v69
  %485 = vmatprep.subr.mxu0 0.0
  %486 = vmatpush2.msra.mxu0 %v68
  %487 = vmatprep.subr.mxu0 0.0
  %488 = vmatpush2.msra.mxu0 %v67
  %489 = vmatprep.subr.mxu0 0.0
  %490 = vmatpush2.msra.mxu0 %v66
  %491 = vmatprep.subr.mxu0 0.0
  %492 = vmatpush2.msra.mxu0 %v65
  %493 = vmatprep.subr.mxu0 0.0
  %494 = vmatpush2.msra.mxu0 %v64
  %495 = vmatprep.subr.mxu0 0.0
  %496 = vmatpush2.msra.mxu0 %v63
  %497 = vmatprep.mubr.f32.mxu0 %v353
  %498 = vmatmul.mubr.f32.gmra.mxu0 %v352
  %v499 = vpop.f32.mrf.mxu0
  %v500 = vadd.f32 %v430, %v499
  %v501 = vpop.f32.mrf.mxu0
  %502 = vdwg.mxu0
  %503 = vmatprep.subr.mxu0 0.0
  %504 = vmatpush1.msra.mxu0 0.0
  %505 = vmatprep.subr.mxu0 0.0
  %506 = vmatpush1.msra.mxu0 0.0
  %507 = vmatprep.subr.mxu0 0.0
  %508 = vmatpush1.msra.mxu0 0.0
  %509 = vmatprep.subr.mxu0 0.0
  %510 = vmatpush1.msra.mxu0 0.0
  %511 = vmatprep.subr.mxu0 0.0
  %512 = vmatpush1.msra.mxu0 0.0
  %513 = vmatprep.subr.mxu0 0.0
  %514 = vmatpush1.msra.mxu0 0.0
  %515 = vmatprep.subr.mxu0 0.0
  %516 = vmatpush1.msra.mxu0 0.0
  %517 = vmatprep.subr.mxu0 0.0
  %518 = vmatpush1.msra.mxu0 %v361
  %519 = vmatprep.subr.mxu0 0.0
  %520 = vmatpush1.msra.mxu0 %v86
  %521 = vmatprep.subr.mxu0 0.0
  %522 = vmatpush1.msra.mxu0 %v85
  %523 = vmatprep.subr.mxu0 0.0
  %524 = vmatpush1.msra.mxu0 %v84
  %525 = vmatprep.subr.mxu0 0.0
  %526 = vmatpush1.msra.mxu0 %v83
  %527 = vmatprep.subr.mxu0 0.0
  %528 = vmatpush1.msra.mxu0 %v82
  %529 = vmatprep.subr.mxu0 0.0
  %530 = vmatpush1.msra.mxu0 %v81
  %531 = vmatprep.subr.mxu0 0.0
  %532 = vmatpush1.msra.mxu0 %v80
  %533 = vmatprep.subr.mxu0 0.0
  %534 = vmatpush1.msra.mxu0 %v79
  %535 = vmatprep.subr.mxu0 0.0
  %536 = vmatpush2.msra.mxu0 0.0
  %537 = vmatprep.subr.mxu0 0.0
  %538 = vmatpush2.msra.mxu0 0.0
  %539 = vmatprep.subr.mxu0 0.0
  %540 = vmatpush2.msra.mxu0 0.0
  %541 = vmatprep.subr.mxu0 0.0
  %542 = vmatpush2.msra.mxu0 0.0
  %543 = vmatprep.subr.mxu0 0.0
  %544 = vmatpush2.msra.mxu0 0.0
  %545 = vmatprep.subr.mxu0 0.0
  %546 = vmatpush2.msra.mxu0 0.0
  %547 = vmatprep.subr.mxu0 0.0
  %548 = vmatpush2.msra.mxu0 0.0
  %549 = vmatprep.subr.mxu0 0.0
  %550 = vmatpush2.msra.mxu0 0.0
  %551 = vmatprep.subr.mxu0 0.0
  %552 = vmatpush2.msra.mxu0 0.0
  %553 = vmatprep.subr.mxu0 0.0
  %554 = vmatpush2.msra.mxu0 0.0
  %555 = vmatprep.subr.mxu0 0.0
  %556 = vmatpush2.msra.mxu0 0.0
  %557 = vmatprep.subr.mxu0 0.0
  %558 = vmatpush2.msra.mxu0 0.0
  %559 = vmatprep.subr.mxu0 0.0
  %560 = vmatpush2.msra.mxu0 0.0
  %561 = vmatprep.subr.mxu0 0.0
  %562 = vmatpush2.msra.mxu0 0.0
  %563 = vmatprep.subr.mxu0 0.0
  %564 = vmatpush2.msra.mxu0 0.0
  %565 = vmatprep.subr.mxu0 0.0
  %566 = vmatpush2.msra.mxu0 0.0
  %567 = vmatprep.mubr.f32.mxu0 0.0
  %568 = vmatmul.mubr.f32.gmra.mxu0 %v357
  %v569 = vpop.f32.mrf.mxu0
  %v570 = vadd.f32 %v500, %v569
  %v571 = vpop.f32.mrf.mxu0
  %572 = vdwg.mxu0
  %vm573 = vcmask 29696
  %574 = vst.msk [vmem:[%s3] sm:$0x3f] %vm573, %v570
  %s575 = scalar_lea.vmem %s0, 160
  %v576 = vld [vmem:[%s575] sm:$0xff]
  %v577 = vld [vmem:[%s575 + $0x8] sm:$0xff]
  %v578 = vld [vmem:[%s575 + $0x10] sm:$0xff]
  %v579 = vld [vmem:[%s575 + $0x18] sm:$0xff]
  %v580 = vld [vmem:[%s575 + $0x20] sm:$0xff]
  %v581 = vld [vmem:[%s575 + $0x28] sm:$0xff]
  %v582 = vld [vmem:[%s575 + $0x30] sm:$0xff]
  %v583 = vld [vmem:[%s575 + $0x38] sm:$0xff]
  %v584 = vld [vmem:[%s575 + $0x40] sm:$0xff]
  %v585 = vld [vmem:[%s575 + $0x48] sm:$0xff]
  %v586 = vld [vmem:[%s575 + $0x50] sm:$0xff]
  %v587 = vld [vmem:[%s575 + $0x58] sm:$0xff]
  %v588 = vld [vmem:[%s575 + $0x60] sm:$0xff]
  %v589 = vld [vmem:[%s575 + $0x68] sm:$0xff]
  %v590 = vld [vmem:[%s575 + $0x70] sm:$0xff]
  %v591 = vld [vmem:[%s575 + $0x78] sm:$0xf]
  %v592 = vld [vmem:[%s575 + $0x80] sm:$0xf]
  %v593 = vld [vmem:[%s575 + $0x88] sm:$0xf]
  %v594 = vld [vmem:[%s575 + $0x90] sm:$0xf]
  %v595 = vld [vmem:[%s575 + $0x98] sm:$0xf]
  %v597 = vsel %vm112, %v591, 0
  %v600 = vsel %vm112, %v592, 0
  %v603 = vsel %vm112, %v593, 0
  %v606 = vsel %vm112, %v594, 0
  %v609 = vsel %vm112, %v595, 0
  %611 = vmatprep.subr.mxu0 0.0
  %612 = vmatpush1.msra.mxu0 0.0
  %613 = vmatprep.subr.mxu0 0.0
  %614 = vmatpush1.msra.mxu0 0.0
  %615 = vmatprep.subr.mxu0 0.0
  %616 = vmatpush1.msra.mxu0 0.0
  %617 = vmatprep.subr.mxu0 0.0
  %618 = vmatpush1.msra.mxu0 0.0
  %619 = vmatprep.subr.mxu0 0.0
  %620 = vmatpush1.msra.mxu0 0.0
  %621 = vmatprep.subr.mxu0 0.0
  %622 = vmatpush1.msra.mxu0 0.0
  %623 = vmatprep.subr.mxu0 0.0
  %624 = vmatpush1.msra.mxu0 0.0
  %625 = vmatprep.subr.mxu0 0.0
  %626 = vmatpush1.msra.mxu0 0.0
  %627 = vmatprep.subr.mxu0 0.0
  %628 = vmatpush1.msra.mxu0 0.0
  %629 = vmatprep.subr.mxu0 0.0
  %630 = vmatpush1.msra.mxu0 0.0
  %631 = vmatprep.subr.mxu0 0.0
  %632 = vmatpush1.msra.mxu0 0.0
  %633 = vmatprep.subr.mxu0 0.0
  %634 = vmatpush1.msra.mxu0 0.0
  %635 = vmatprep.subr.mxu0 %v600
  %636 = vmatpush1.msra.mxu0 %v597
  %637 = vmatprep.subr.mxu0 %v587
  %638 = vmatpush1.msra.mxu0 %v586
  %639 = vmatprep.subr.mxu0 %v582
  %640 = vmatpush1.msra.mxu0 %v581
  %641 = vmatprep.subr.mxu0 %v577
  %642 = vmatpush1.msra.mxu0 %v576
  %643 = vmatprep.subr.mxu0 0.0
  %644 = vmatpush2.msra.mxu0 0.0
  %645 = vmatprep.subr.mxu0 0.0
  %646 = vmatpush2.msra.mxu0 0.0
  %647 = vmatprep.subr.mxu0 0.0
  %648 = vmatpush2.msra.mxu0 0.0
  %649 = vmatprep.subr.mxu0 0.0
  %650 = vmatpush2.msra.mxu0 0.0
  %651 = vmatprep.subr.mxu0 0.0
  %652 = vmatpush2.msra.mxu0 0.0
  %653 = vmatprep.subr.mxu0 0.0
  %654 = vmatpush2.msra.mxu0 0.0
  %655 = vmatprep.subr.mxu0 0.0
  %656 = vmatpush2.msra.mxu0 0.0
  %657 = vmatprep.subr.mxu0 0.0
  %658 = vmatpush2.msra.mxu0 0.0
  %659 = vmatprep.subr.mxu0 0.0
  %660 = vmatpush2.msra.mxu0 0.0
  %661 = vmatprep.subr.mxu0 0.0
  %662 = vmatpush2.msra.mxu0 0.0
  %663 = vmatprep.subr.mxu0 0.0
  %664 = vmatpush2.msra.mxu0 0.0
  %665 = vmatprep.subr.mxu0 0.0
  %666 = vmatpush2.msra.mxu0 0.0
  %667 = vmatprep.subr.mxu0 0.0
  %668 = vmatpush2.msra.mxu0 0.0
  %669 = vmatprep.subr.mxu0 0.0
  %670 = vmatpush2.msra.mxu0 0.0
  %671 = vmatprep.subr.mxu0 0.0
  %672 = vmatpush2.msra.mxu0 0.0
  %673 = vmatprep.subr.mxu0 0.0
  %674 = vmatpush2.msra.mxu0 0.0
  %675 = vmatprep.mubr.f32.mxu0 0.0
  %676 = vmatmul.mubr.f32.gmra.mxu0 %v110
  %v677 = vpop.f32.mrf.mxu0
  %v678 = vadd.f32 0.0, %v677
  %v679 = vpop.f32.mrf.mxu0
  %v680 = vadd.f32 0.0, %v679
  %681 = vdwg.mxu0
  %682 = vmatprep.subr.mxu0 0.0
  %683 = vmatpush1.msra.mxu0 0.0
  %684 = vmatprep.subr.mxu0 0.0
  %685 = vmatpush1.msra.mxu0 0.0
  %686 = vmatprep.subr.mxu0 0.0
  %687 = vmatpush1.msra.mxu0 0.0
  %688 = vmatprep.subr.mxu0 0.0
  %689 = vmatpush1.msra.mxu0 0.0
  %690 = vmatprep.subr.mxu0 0.0
  %691 = vmatpush1.msra.mxu0 0.0
  %692 = vmatprep.subr.mxu0 0.0
  %693 = vmatpush1.msra.mxu0 0.0
  %694 = vmatprep.subr.mxu0 0.0
  %695 = vmatpush1.msra.mxu0 0.0
  %696 = vmatprep.subr.mxu0 0.0
  %697 = vmatpush1.msra.mxu0 0.0
  %698 = vmatprep.subr.mxu0 0.0
  %699 = vmatpush1.msra.mxu0 0.0
  %700 = vmatprep.subr.mxu0 0.0
  %701 = vmatpush1.msra.mxu0 0.0
  %702 = vmatprep.subr.mxu0 0.0
  %703 = vmatpush1.msra.mxu0 0.0
  %704 = vmatprep.subr.mxu0 0.0
  %705 = vmatpush1.msra.mxu0 0.0
  %706 = vmatprep.subr.mxu0 %v606
  %707 = vmatpush1.msra.mxu0 %v603
  %708 = vmatprep.subr.mxu0 %v589
  %709 = vmatpush1.msra.mxu0 %v588
  %710 = vmatprep.subr.mxu0 %v584
  %711 = vmatpush1.msra.mxu0 %v583
  %712 = vmatprep.subr.mxu0 %v579
  %713 = vmatpush1.msra.mxu0 %v578
  %714 = vmatprep.subr.mxu0 0.0
  %715 = vmatpush2.msra.mxu0 0.0
  %716 = vmatprep.subr.mxu0 0.0
  %717 = vmatpush2.msra.mxu0 0.0
  %718 = vmatprep.subr.mxu0 0.0
  %719 = vmatpush2.msra.mxu0 0.0
  %720 = vmatprep.subr.mxu0 0.0
  %721 = vmatpush2.msra.mxu0 0.0
  %722 = vmatprep.subr.mxu0 0.0
  %723 = vmatpush2.msra.mxu0 0.0
  %724 = vmatprep.subr.mxu0 0.0
  %725 = vmatpush2.msra.mxu0 0.0
  %726 = vmatprep.subr.mxu0 0.0
  %727 = vmatpush2.msra.mxu0 0.0
  %728 = vmatprep.subr.mxu0 0.0
  %729 = vmatpush2.msra.mxu0 0.0
  %730 = vmatprep.subr.mxu0 0.0
  %731 = vmatpush2.msra.mxu0 0.0
  %732 = vmatprep.subr.mxu0 0.0
  %733 = vmatpush2.msra.mxu0 0.0
  %734 = vmatprep.subr.mxu0 0.0
  %735 = vmatpush2.msra.mxu0 0.0
  %736 = vmatprep.subr.mxu0 0.0
  %737 = vmatpush2.msra.mxu0 0.0
  %738 = vmatprep.subr.mxu0 0.0
  %739 = vmatpush2.msra.mxu0 0.0
  %740 = vmatprep.subr.mxu0 0.0
  %741 = vmatpush2.msra.mxu0 0.0
  %742 = vmatprep.subr.mxu0 0.0
  %743 = vmatpush2.msra.mxu0 0.0
  %744 = vmatprep.subr.mxu0 0.0
  %745 = vmatpush2.msra.mxu0 0.0
  %746 = vmatprep.mubr.f32.mxu0 0.0
  %747 = vmatmul.mubr.f32.gmra.mxu0 %v110
  %v748 = vpop.f32.mrf.mxu0
  %v749 = vadd.f32 0.0, %v748
  %v750 = vpop.f32.mrf.mxu0
  %v751 = vadd.f32 0.0, %v750
  %752 = vdwg.mxu0
  %753 = vmatprep.subr.mxu0 0.0
  %754 = vmatpush1.msra.mxu0 0.0
  %755 = vmatprep.subr.mxu0 0.0
  %756 = vmatpush1.msra.mxu0 0.0
  %757 = vmatprep.subr.mxu0 0.0
  %758 = vmatpush1.msra.mxu0 0.0
  %759 = vmatprep.subr.mxu0 0.0
  %760 = vmatpush1.msra.mxu0 0.0
  %761 = vmatprep.subr.mxu0 0.0
  %762 = vmatpush1.msra.mxu0 0.0
  %763 = vmatprep.subr.mxu0 0.0
  %764 = vmatpush1.msra.mxu0 0.0
  %765 = vmatprep.subr.mxu0 0.0
  %766 = vmatpush1.msra.mxu0 0.0
  %767 = vmatprep.subr.mxu0 0.0
  %768 = vmatpush1.msra.mxu0 0.0
  %769 = vmatprep.subr.mxu0 0.0
  %770 = vmatpush1.msra.mxu0 0.0
  %771 = vmatprep.subr.mxu0 0.0
  %772 = vmatpush1.msra.mxu0 0.0
  %773 = vmatprep.subr.mxu0 0.0
  %774 = vmatpush1.msra.mxu0 0.0
  %775 = vmatprep.subr.mxu0 0.0
  %776 = vmatpush1.msra.mxu0 0.0
  %777 = vmatprep.subr.mxu0 0.0
  %778 = vmatpush1.msra.mxu0 %v609
  %779 = vmatprep.subr.mxu0 0.0
  %780 = vmatpush1.msra.mxu0 %v590
  %781 = vmatprep.subr.mxu0 0.0
  %782 = vmatpush1.msra.mxu0 %v585
  %783 = vmatprep.subr.mxu0 0.0
  %784 = vmatpush1.msra.mxu0 %v580
  %785 = vmatprep.subr.mxu0 0.0
  %786 = vmatpush2.msra.mxu0 0.0
  %787 = vmatprep.subr.mxu0 0.0
  %788 = vmatpush2.msra.mxu0 0.0
  %789 = vmatprep.subr.mxu0 0.0
  %790 = vmatpush2.msra.mxu0 0.0
  %791 = vmatprep.subr.mxu0 0.0
  %792 = vmatpush2.msra.mxu0 0.0
  %793 = vmatprep.subr.mxu0 0.0
  %794 = vmatpush2.msra.mxu0 0.0
  %795 = vmatprep.subr.mxu0 0.0
  %796 = vmatpush2.msra.mxu0 0.0
  %797 = vmatprep.subr.mxu0 0.0
  %798 = vmatpush2.msra.mxu0 0.0
  %799 = vmatprep.subr.mxu0 0.0
  %800 = vmatpush2.msra.mxu0 0.0
  %801 = vmatprep.subr.mxu0 0.0
  %802 = vmatpush2.msra.mxu0 0.0
  %803 = vmatprep.subr.mxu0 0.0
  %804 = vmatpush2.msra.mxu0 0.0
  %805 = vmatprep.subr.mxu0 0.0
  %806 = vmatpush2.msra.mxu0 0.0
  %807 = vmatprep.subr.mxu0 0.0
  %808 = vmatpush2.msra.mxu0 0.0
  %809 = vmatprep.subr.mxu0 0.0
  %810 = vmatpush2.msra.mxu0 0.0
  %811 = vmatprep.subr.mxu0 0.0
  %812 = vmatpush2.msra.mxu0 0.0
  %813 = vmatprep.subr.mxu0 0.0
  %814 = vmatpush2.msra.mxu0 0.0
  %815 = vmatprep.subr.mxu0 0.0
  %816 = vmatpush2.msra.mxu0 0.0
  %817 = vmatprep.mubr.f32.mxu0 0.0
  %818 = vmatmul.mubr.f32.gmra.mxu0 %v110
  %v819 = vpop.f32.mrf.mxu0
  %v820 = vadd.f32 0.0, %v819
  %v821 = vpop.f32.mrf.mxu0
  %822 = vdwg.mxu0
  %vm823 = vcmp.gt.f32.partialorder %v678, 0.0
  %vm824 = vcmp.gt.f32.partialorder %v680, 0.0
  %vm825 = vcmp.gt.f32.partialorder %v749, 0.0
  %vm826 = vcmp.gt.f32.partialorder %v751, 0.0
  %vm827 = vcmp.gt.f32.partialorder %v820, 0.0
  %v828 = vmul.f32 %v678, -0.189
  %v829 = vmul.f32 %v680, -0.189
  %v830 = vmul.f32 %v749, -0.189
  %v831 = vmul.f32 %v751, -0.189
  %v832 = vmul.f32 %v820, -0.189
  %v833 = vsel %vm823, %v678, %v828
  %v834 = vsel %vm824, %v680, %v829
  %v835 = vsel %vm825, %v749, %v830
  %v836 = vsel %vm826, %v751, %v831
  %v837 = vsel %vm827, %v820, %v832
  %v839 = vsel %vm355, %v837, 0
  %841 = vmatprep.subr.mxu0 0.0
  %842 = vmatpush1.msra.mxu0 %v30
  %843 = vmatprep.subr.mxu0 0.0
  %844 = vmatpush1.msra.mxu0 %v29
  %845 = vmatprep.subr.mxu0 0.0
  %846 = vmatpush1.msra.mxu0 %v28
  %847 = vmatprep.subr.mxu0 0.0
  %848 = vmatpush1.msra.mxu0 %v27
  %849 = vmatprep.subr.mxu0 0.0
  %850 = vmatpush1.msra.mxu0 %v26
  %851 = vmatprep.subr.mxu0 0.0
  %852 = vmatpush1.msra.mxu0 %v25
  %853 = vmatprep.subr.mxu0 0.0
  %854 = vmatpush1.msra.mxu0 %v24
  %855 = vmatprep.subr.mxu0 0.0
  %856 = vmatpush1.msra.mxu0 %v23
  %857 = vmatprep.subr.mxu0 0.0
  %858 = vmatpush1.msra.mxu0 %v22
  %859 = vmatprep.subr.mxu0 0.0
  %860 = vmatpush1.msra.mxu0 %v21
  %861 = vmatprep.subr.mxu0 0.0
  %862 = vmatpush1.msra.mxu0 %v20
  %863 = vmatprep.subr.mxu0 0.0
  %864 = vmatpush1.msra.mxu0 %v19
  %865 = vmatprep.subr.mxu0 0.0
  %866 = vmatpush1.msra.mxu0 %v18
  %867 = vmatprep.subr.mxu0 0.0
  %868 = vmatpush1.msra.mxu0 %v17
  %869 = vmatprep.subr.mxu0 0.0
  %870 = vmatpush1.msra.mxu0 %v16
  %871 = vmatprep.subr.mxu0 0.0
  %872 = vmatpush1.msra.mxu0 %v15
  %873 = vmatprep.subr.mxu0 0.0
  %874 = vmatpush2.msra.mxu0 %v46
  %875 = vmatprep.subr.mxu0 0.0
  %876 = vmatpush2.msra.mxu0 %v45
  %877 = vmatprep.subr.mxu0 0.0
  %878 = vmatpush2.msra.mxu0 %v44
  %879 = vmatprep.subr.mxu0 0.0
  %880 = vmatpush2.msra.mxu0 %v43
  %881 = vmatprep.subr.mxu0 0.0
  %882 = vmatpush2.msra.mxu0 %v42
  %883 = vmatprep.subr.mxu0 0.0
  %884 = vmatpush2.msra.mxu0 %v41
  %885 = vmatprep.subr.mxu0 0.0
  %886 = vmatpush2.msra.mxu0 %v40
  %887 = vmatprep.subr.mxu0 0.0
  %888 = vmatpush2.msra.mxu0 %v39
  %889 = vmatprep.subr.mxu0 0.0
  %890 = vmatpush2.msra.mxu0 %v38
  %891 = vmatprep.subr.mxu0 0.0
  %892 = vmatpush2.msra.mxu0 %v37
  %893 = vmatprep.subr.mxu0 0.0
  %894 = vmatpush2.msra.mxu0 %v36
  %895 = vmatprep.subr.mxu0 0.0
  %896 = vmatpush2.msra.mxu0 %v35
  %897 = vmatprep.subr.mxu0 0.0
  %898 = vmatpush2.msra.mxu0 %v34
  %899 = vmatprep.subr.mxu0 0.0
  %900 = vmatpush2.msra.mxu0 %v33
  %901 = vmatprep.subr.mxu0 0.0
  %902 = vmatpush2.msra.mxu0 %v32
  %903 = vmatprep.subr.mxu0 0.0
  %904 = vmatpush2.msra.mxu0 %v31
  %905 = vmatprep.mubr.f32.mxu0 %v834
  %906 = vmatmul.mubr.f32.gmra.mxu0 %v833
  %v907 = vpop.f32.mrf.mxu0
  %v908 = vadd.f32 0.0, %v907
  %v909 = vpop.f32.mrf.mxu0
  %910 = vdwg.mxu0
  %911 = vmatprep.subr.mxu0 0.0
  %912 = vmatpush1.msra.mxu0 %v62
  %913 = vmatprep.subr.mxu0 0.0
  %914 = vmatpush1.msra.mxu0 %v61
  %915 = vmatprep.subr.mxu0 0.0
  %916 = vmatpush1.msra.mxu0 %v60
  %917 = vmatprep.subr.mxu0 0.0
  %918 = vmatpush1.msra.mxu0 %v59
  %919 = vmatprep.subr.mxu0 0.0
  %920 = vmatpush1.msra.mxu0 %v58
  %921 = vmatprep.subr.mxu0 0.0
  %922 = vmatpush1.msra.mxu0 %v57
  %923 = vmatprep.subr.mxu0 0.0
  %924 = vmatpush1.msra.mxu0 %v56
  %925 = vmatprep.subr.mxu0 0.0
  %926 = vmatpush1.msra.mxu0 %v55
  %927 = vmatprep.subr.mxu0 0.0
  %928 = vmatpush1.msra.mxu0 %v54
  %929 = vmatprep.subr.mxu0 0.0
  %930 = vmatpush1.msra.mxu0 %v53
  %931 = vmatprep.subr.mxu0 0.0
  %932 = vmatpush1.msra.mxu0 %v52
  %933 = vmatprep.subr.mxu0 0.0
  %934 = vmatpush1.msra.mxu0 %v51
  %935 = vmatprep.subr.mxu0 0.0
  %936 = vmatpush1.msra.mxu0 %v50
  %937 = vmatprep.subr.mxu0 0.0
  %938 = vmatpush1.msra.mxu0 %v49
  %939 = vmatprep.subr.mxu0 0.0
  %940 = vmatpush1.msra.mxu0 %v48
  %941 = vmatprep.subr.mxu0 0.0
  %942 = vmatpush1.msra.mxu0 %v47
  %943 = vmatprep.subr.mxu0 0.0
  %944 = vmatpush2.msra.mxu0 %v78
  %945 = vmatprep.subr.mxu0 0.0
  %946 = vmatpush2.msra.mxu0 %v77
  %947 = vmatprep.subr.mxu0 0.0
  %948 = vmatpush2.msra.mxu0 %v76
  %949 = vmatprep.subr.mxu0 0.0
  %950 = vmatpush2.msra.mxu0 %v75
  %951 = vmatprep.subr.mxu0 0.0
  %952 = vmatpush2.msra.mxu0 %v74
  %953 = vmatprep.subr.mxu0 0.0
  %954 = vmatpush2.msra.mxu0 %v73
  %955 = vmatprep.subr.mxu0 0.0
  %956 = vmatpush2.msra.mxu0 %v72
  %957 = vmatprep.subr.mxu0 0.0
  %958 = vmatpush2.msra.mxu0 %v71
  %959 = vmatprep.subr.mxu0 0.0
  %960 = vmatpush2.msra.mxu0 %v70
  %961 = vmatprep.subr.mxu0 0.0
  %962 = vmatpush2.msra.mxu0 %v69
  %963 = vmatprep.subr.mxu0 0.0
  %964 = vmatpush2.msra.mxu0 %v68
  %965 = vmatprep.subr.mxu0 0.0
  %966 = vmatpush2.msra.mxu0 %v67
  %967 = vmatprep.subr.mxu0 0.0
  %968 = vmatpush2.msra.mxu0 %v66
  %969 = vmatprep.subr.mxu0 0.0
  %970 = vmatpush2.msra.mxu0 %v65
  %971 = vmatprep.subr.mxu0 0.0
  %972 = vmatpush2.msra.mxu0 %v64
  %973 = vmatprep.subr.mxu0 0.0
  %974 = vmatpush2.msra.mxu0 %v63
  %975 = vmatprep.mubr.f32.mxu0 %v836
  %976 = vmatmul.mubr.f32.gmra.mxu0 %v835
  %v977 = vpop.f32.mrf.mxu0
  %v978 = vadd.f32 %v908, %v977
  %v979 = vpop.f32.mrf.mxu0
  %980 = vdwg.mxu0
  %981 = vmatprep.subr.mxu0 0.0
  %982 = vmatpush1.msra.mxu0 0.0
  %983 = vmatprep.subr.mxu0 0.0
  %984 = vmatpush1.msra.mxu0 0.0
  %985 = vmatprep.subr.mxu0 0.0
  %986 = vmatpush1.msra.mxu0 0.0
  %987 = vmatprep.subr.mxu0 0.0
  %988 = vmatpush1.msra.mxu0 0.0
  %989 = vmatprep.subr.mxu0 0.0
  %990 = vmatpush1.msra.mxu0 0.0
  %991 = vmatprep.subr.mxu0 0.0
  %992 = vmatpush1.msra.mxu0 0.0
  %993 = vmatprep.subr.mxu0 0.0
  %994 = vmatpush1.msra.mxu0 0.0
  %995 = vmatprep.subr.mxu0 0.0
  %996 = vmatpush1.msra.mxu0 %v361
  %997 = vmatprep.subr.mxu0 0.0
  %998 = vmatpush1.msra.mxu0 %v86
  %999 = vmatprep.subr.mxu0 0.0
  %1000 = vmatpush1.msra.mxu0 %v85
  %1001 = vmatprep.subr.mxu0 0.0
  %1002 = vmatpush1.msra.mxu0 %v84
  %1003 = vmatprep.subr.mxu0 0.0
  %1004 = vmatpush1.msra.mxu0 %v83
  %1005 = vmatprep.subr.mxu0 0.0
  %1006 = vmatpush1.msra.mxu0 %v82
  %1007 = vmatprep.subr.mxu0 0.0
  %1008 = vmatpush1.msra.mxu0 %v81
  %1009 = vmatprep.subr.mxu0 0.0
  %1010 = vmatpush1.msra.mxu0 %v80
  %1011 = vmatprep.subr.mxu0 0.0
  %1012 = vmatpush1.msra.mxu0 %v79
  %1013 = vmatprep.subr.mxu0 0.0
  %1014 = vmatpush2.msra.mxu0 0.0
  %1015 = vmatprep.subr.mxu0 0.0
  %1016 = vmatpush2.msra.mxu0 0.0
  %1017 = vmatprep.subr.mxu0 0.0
  %1018 = vmatpush2.msra.mxu0 0.0
  %1019 = vmatprep.subr.mxu0 0.0
  %1020 = vmatpush2.msra.mxu0 0.0
  %1021 = vmatprep.subr.mxu0 0.0
  %1022 = vmatpush2.msra.mxu0 0.0
  %1023 = vmatprep.subr.mxu0 0.0
  %1024 = vmatpush2.msra.mxu0 0.0
  %1025 = vmatprep.subr.mxu0 0.0
  %1026 = vmatpush2.msra.mxu0 0.0
  %1027 = vmatprep.subr.mxu0 0.0
  %1028 = vmatpush2.msra.mxu0 0.0
  %1029 = vmatprep.subr.mxu0 0.0
  %1030 = vmatpush2.msra.mxu0 0.0
  %1031 = vmatprep.subr.mxu0 0.0
  %1032 = vmatpush2.msra.mxu0 0.0
  %1033 = vmatprep.subr.mxu0 0.0
  %1034 = vmatpush2.msra.mxu0 0.0
  %1035 = vmatprep.subr.mxu0 0.0
  %1036 = vmatpush2.msra.mxu0 0.0
  %1037 = vmatprep.subr.mxu0 0.0
  %1038 = vmatpush2.msra.mxu0 0.0
  %1039 = vmatprep.subr.mxu0 0.0
  %1040 = vmatpush2.msra.mxu0 0.0
  %1041 = vmatprep.subr.mxu0 0.0
  %1042 = vmatpush2.msra.mxu0 0.0
  %1043 = vmatprep.subr.mxu0 0.0
  %1044 = vmatpush2.msra.mxu0 0.0
  %1045 = vmatprep.mubr.f32.mxu0 0.0
  %1046 = vmatmul.mubr.f32.gmra.mxu0 %v839
  %v1047 = vpop.f32.mrf.mxu0
  %v1048 = vadd.f32 %v978, %v1047
  %v1049 = vpop.f32.mrf.mxu0
  %1050 = vdwg.mxu0
  %s1051 = scalar_lea.vmem %s3, 8
  %1052 = vst.msk [vmem:[%s1051] sm:$0x3f] %vm573, %v1048
  %s1053 = scalar_lea.vmem %s0, 320
  %v1054 = vld [vmem:[%s1053] sm:$0xff]
  %v1055 = vld [vmem:[%s1053 + $0x8] sm:$0xff]
  %v1056 = vld [vmem:[%s1053 + $0x10] sm:$0xff]
  %v1057 = vld [vmem:[%s1053 + $0x18] sm:$0xff]
  %v1058 = vld [vmem:[%s1053 + $0x20] sm:$0xff]
  %v1059 = vld [vmem:[%s1053 + $0x28] sm:$0xff]
  %v1060 = vld [vmem:[%s1053 + $0x30] sm:$0xff]
  %v1061 = vld [vmem:[%s1053 + $0x38] sm:$0xff]
  %v1062 = vld [vmem:[%s1053 + $0x40] sm:$0xff]
  %v1063 = vld [vmem:[%s1053 + $0x48] sm:$0xff]
  %v1064 = vld [vmem:[%s1053 + $0x50] sm:$0xff]
  %v1065 = vld [vmem:[%s1053 + $0x58] sm:$0xff]
  %v1066 = vld [vmem:[%s1053 + $0x60] sm:$0xff]
  %v1067 = vld [vmem:[%s1053 + $0x68] sm:$0xff]
  %v1068 = vld [vmem:[%s1053 + $0x70] sm:$0xff]
  %v1069 = vld [vmem:[%s1053 + $0x78] sm:$0xf]
  %v1070 = vld [vmem:[%s1053 + $0x80] sm:$0xf]
  %v1071 = vld [vmem:[%s1053 + $0x88] sm:$0xf]
  %v1072 = vld [vmem:[%s1053 + $0x90] sm:$0xf]
  %v1073 = vld [vmem:[%s1053 + $0x98] sm:$0xf]
  %v1075 = vsel %vm112, %v1069, 0
  %v1078 = vsel %vm112, %v1070, 0
  %v1081 = vsel %vm112, %v1071, 0
  %v1084 = vsel %vm112, %v1072, 0
  %v1087 = vsel %vm112, %v1073, 0
  %1089 = vmatprep.subr.mxu0 0.0
  %1090 = vmatpush1.msra.mxu0 0.0
  %1091 = vmatprep.subr.mxu0 0.0
  %1092 = vmatpush1.msra.mxu0 0.0
  %1093 = vmatprep.subr.mxu0 0.0
  %1094 = vmatpush1.msra.mxu0 0.0
  %1095 = vmatprep.subr.mxu0 0.0
  %1096 = vmatpush1.msra.mxu0 0.0
  %1097 = vmatprep.subr.mxu0 0.0
  %1098 = vmatpush1.msra.mxu0 0.0
  %1099 = vmatprep.subr.mxu0 0.0
  %1100 = vmatpush1.msra.mxu0 0.0
  %1101 = vmatprep.subr.mxu0 0.0
  %1102 = vmatpush1.msra.mxu0 0.0
  %1103 = vmatprep.subr.mxu0 0.0
  %1104 = vmatpush1.msra.mxu0 0.0
  %1105 = vmatprep.subr.mxu0 0.0
  %1106 = vmatpush1.msra.mxu0 0.0
  %1107 = vmatprep.subr.mxu0 0.0
  %1108 = vmatpush1.msra.mxu0 0.0
  %1109 = vmatprep.subr.mxu0 0.0
  %1110 = vmatpush1.msra.mxu0 0.0
  %1111 = vmatprep.subr.mxu0 0.0
  %1112 = vmatpush1.msra.mxu0 0.0
  %1113 = vmatprep.subr.mxu0 %v1078
  %1114 = vmatpush1.msra.mxu0 %v1075
  %1115 = vmatprep.subr.mxu0 %v1065
  %1116 = vmatpush1.msra.mxu0 %v1064
  %1117 = vmatprep.subr.mxu0 %v1060
  %1118 = vmatpush1.msra.mxu0 %v1059
  %1119 = vmatprep.subr.mxu0 %v1055
  %1120 = vmatpush1.msra.mxu0 %v1054
  %1121 = vmatprep.subr.mxu0 0.0
  %1122 = vmatpush2.msra.mxu0 0.0
  %1123 = vmatprep.subr.mxu0 0.0
  %1124 = vmatpush2.msra.mxu0 0.0
  %1125 = vmatprep.subr.mxu0 0.0
  %1126 = vmatpush2.msra.mxu0 0.0
  %1127 = vmatprep.subr.mxu0 0.0
  %1128 = vmatpush2.msra.mxu0 0.0
  %1129 = vmatprep.subr.mxu0 0.0
  %1130 = vmatpush2.msra.mxu0 0.0
  %1131 = vmatprep.subr.mxu0 0.0
  %1132 = vmatpush2.msra.mxu0 0.0
  %1133 = vmatprep.subr.mxu0 0.0
  %1134 = vmatpush2.msra.mxu0 0.0
  %1135 = vmatprep.subr.mxu0 0.0
  %1136 = vmatpush2.msra.mxu0 0.0
  %1137 = vmatprep.subr.mxu0 0.0
  %1138 = vmatpush2.msra.mxu0 0.0
  %1139 = vmatprep.subr.mxu0 0.0
  %1140 = vmatpush2.msra.mxu0 0.0
  %1141 = vmatprep.subr.mxu0 0.0
  %1142 = vmatpush2.msra.mxu0 0.0
  %1143 = vmatprep.subr.mxu0 0.0
  %1144 = vmatpush2.msra.mxu0 0.0
  %1145 = vmatprep.subr.mxu0 0.0
  %1146 = vmatpush2.msra.mxu0 0.0
  %1147 = vmatprep.subr.mxu0 0.0
  %1148 = vmatpush2.msra.mxu0 0.0
  %1149 = vmatprep.subr.mxu0 0.0
  %1150 = vmatpush2.msra.mxu0 0.0
  %1151 = vmatprep.subr.mxu0 0.0
  %1152 = vmatpush2.msra.mxu0 0.0
  %1153 = vmatprep.mubr.f32.mxu0 0.0
  %1154 = vmatmul.mubr.f32.gmra.mxu0 %v110
  %v1155 = vpop.f32.mrf.mxu0
  %v1156 = vadd.f32 0.0, %v1155
  %v1157 = vpop.f32.mrf.mxu0
  %v1158 = vadd.f32 0.0, %v1157
  %1159 = vdwg.mxu0
  %1160 = vmatprep.subr.mxu0 0.0
  %1161 = vmatpush1.msra.mxu0 0.0
  %1162 = vmatprep.subr.mxu0 0.0
  %1163 = vmatpush1.msra.mxu0 0.0
  %1164 = vmatprep.subr.mxu0 0.0
  %1165 = vmatpush1.msra.mxu0 0.0
  %1166 = vmatprep.subr.mxu0 0.0
  %1167 = vmatpush1.msra.mxu0 0.0
  %1168 = vmatprep.subr.mxu0 0.0
  %1169 = vmatpush1.msra.mxu0 0.0
  %1170 = vmatprep.subr.mxu0 0.0
  %1171 = vmatpush1.msra.mxu0 0.0
  %1172 = vmatprep.subr.mxu0 0.0
  %1173 = vmatpush1.msra.mxu0 0.0
  %1174 = vmatprep.subr.mxu0 0.0
  %1175 = vmatpush1.msra.mxu0 0.0
  %1176 = vmatprep.subr.mxu0 0.0
  %1177 = vmatpush1.msra.mxu0 0.0
  %1178 = vmatprep.subr.mxu0 0.0
  %1179 = vmatpush1.msra.mxu0 0.0
  %1180 = vmatprep.subr.mxu0 0.0
  %1181 = vmatpush1.msra.mxu0 0.0
  %1182 = vmatprep.subr.mxu0 0.0
  %1183 = vmatpush1.msra.mxu0 0.0
  %1184 = vmatprep.subr.mxu0 %v1084
  %1185 = vmatpush1.msra.mxu0 %v1081
  %1186 = vmatprep.subr.mxu0 %v1067
  %1187 = vmatpush1.msra.mxu0 %v1066
  %1188 = vmatprep.subr.mxu0 %v1062
  %1189 = vmatpush1.msra.mxu0 %v1061
  %1190 = vmatprep.subr.mxu0 %v1057
  %1191 = vmatpush1.msra.mxu0 %v1056
  %1192 = vmatprep.subr.mxu0 0.0
  %1193 = vmatpush2.msra.mxu0 0.0
  %1194 = vmatprep.subr.mxu0 0.0
  %1195 = vmatpush2.msra.mxu0 0.0
  %1196 = vmatprep.subr.mxu0 0.0
  %1197 = vmatpush2.msra.mxu0 0.0
  %1198 = vmatprep.subr.mxu0 0.0
  %1199 = vmatpush2.msra.mxu0 0.0
  %1200 = vmatprep.subr.mxu0 0.0
  %1201 = vmatpush2.msra.mxu0 0.0
  %1202 = vmatprep.subr.mxu0 0.0
  %1203 = vmatpush2.msra.mxu0 0.0
  %1204 = vmatprep.subr.mxu0 0.0
  %1205 = vmatpush2.msra.mxu0 0.0
  %1206 = vmatprep.subr.mxu0 0.0
  %1207 = vmatpush2.msra.mxu0 0.0
  %1208 = vmatprep.subr.mxu0 0.0
  %1209 = vmatpush2.msra.mxu0 0.0
  %1210 = vmatprep.subr.mxu0 0.0
  %1211 = vmatpush2.msra.mxu0 0.0
  %1212 = vmatprep.subr.mxu0 0.0
  %1213 = vmatpush2.msra.mxu0 0.0
  %1214 = vmatprep.subr.mxu0 0.0
  %1215 = vmatpush2.msra.mxu0 0.0
  %1216 = vmatprep.subr.mxu0 0.0
  %1217 = vmatpush2.msra.mxu0 0.0
  %1218 = vmatprep.subr.mxu0 0.0
  %1219 = vmatpush2.msra.mxu0 0.0
  %1220 = vmatprep.subr.mxu0 0.0
  %1221 = vmatpush2.msra.mxu0 0.0
  %1222 = vmatprep.subr.mxu0 0.0
  %1223 = vmatpush2.msra.mxu0 0.0
  %1224 = vmatprep.mubr.f32.mxu0 0.0
  %1225 = vmatmul.mubr.f32.gmra.mxu0 %v110
  %v1226 = vpop.f32.mrf.mxu0
  %v1227 = vadd.f32 0.0, %v1226
  %v1228 = vpop.f32.mrf.mxu0
  %v1229 = vadd.f32 0.0, %v1228
  %1230 = vdwg.mxu0
  %1231 = vmatprep.subr.mxu0 0.0
  %1232 = vmatpush1.msra.mxu0 0.0
  %1233 = vmatprep.subr.mxu0 0.0
  %1234 = vmatpush1.msra.mxu0 0.0
  %1235 = vmatprep.subr.mxu0 0.0
  %1236 = vmatpush1.msra.mxu0 0.0
  %1237 = vmatprep.subr.mxu0 0.0
  %1238 = vmatpush1.msra.mxu0 0.0
  %1239 = vmatprep.subr.mxu0 0.0
  %1240 = vmatpush1.msra.mxu0 0.0
  %1241 = vmatprep.subr.mxu0 0.0
  %1242 = vmatpush1.msra.mxu0 0.0
  %1243 = vmatprep.subr.mxu0 0.0
  %1244 = vmatpush1.msra.mxu0 0.0
  %1245 = vmatprep.subr.mxu0 0.0
  %1246 = vmatpush1.msra.mxu0 0.0
  %1247 = vmatprep.subr.mxu0 0.0
  %1248 = vmatpush1.msra.mxu0 0.0
  %1249 = vmatprep.subr.mxu0 0.0
  %1250 = vmatpush1.msra.mxu0 0.0
  %1251 = vmatprep.subr.mxu0 0.0
  %1252 = vmatpush1.msra.mxu0 0.0
  %1253 = vmatprep.subr.mxu0 0.0
  %1254 = vmatpush1.msra.mxu0 0.0
  %1255 = vmatprep.subr.mxu0 0.0
  %1256 = vmatpush1.msra.mxu0 %v1087
  %1257 = vmatprep.subr.mxu0 0.0
  %1258 = vmatpush1.msra.mxu0 %v1068
  %1259 = vmatprep.subr.mxu0 0.0
  %1260 = vmatpush1.msra.mxu0 %v1063
  %1261 = vmatprep.subr.mxu0 0.0
  %1262 = vmatpush1.msra.mxu0 %v1058
  %1263 = vmatprep.subr.mxu0 0.0
  %1264 = vmatpush2.msra.mxu0 0.0
  %1265 = vmatprep.subr.mxu0 0.0
  %1266 = vmatpush2.msra.mxu0 0.0
  %1267 = vmatprep.subr.mxu0 0.0
  %1268 = vmatpush2.msra.mxu0 0.0
  %1269 = vmatprep.subr.mxu0 0.0
  %1270 = vmatpush2.msra.mxu0 0.0
  %1271 = vmatprep.subr.mxu0 0.0
  %1272 = vmatpush2.msra.mxu0 0.0
  %1273 = vmatprep.subr.mxu0 0.0
  %1274 = vmatpush2.msra.mxu0 0.0
  %1275 = vmatprep.subr.mxu0 0.0
  %1276 = vmatpush2.msra.mxu0 0.0
  %1277 = vmatprep.subr.mxu0 0.0
  %1278 = vmatpush2.msra.mxu0 0.0
  %1279 = vmatprep.subr.mxu0 0.0
  %1280 = vmatpush2.msra.mxu0 0.0
  %1281 = vmatprep.subr.mxu0 0.0
  %1282 = vmatpush2.msra.mxu0 0.0
  %1283 = vmatprep.subr.mxu0 0.0
  %1284 = vmatpush2.msra.mxu0 0.0
  %1285 = vmatprep.subr.mxu0 0.0
  %1286 = vmatpush2.msra.mxu0 0.0
  %1287 = vmatprep.subr.mxu0 0.0
  %1288 = vmatpush2.msra.mxu0 0.0
  %1289 = vmatprep.subr.mxu0 0.0
  %1290 = vmatpush2.msra.mxu0 0.0
  %1291 = vmatprep.subr.mxu0 0.0
  %1292 = vmatpush2.msra.mxu0 0.0
  %1293 = vmatprep.subr.mxu0 0.0
  %1294 = vmatpush2.msra.mxu0 0.0
  %1295 = vmatprep.mubr.f32.mxu0 0.0
  %1296 = vmatmul.mubr.f32.gmra.mxu0 %v110
  %v1297 = vpop.f32.mrf.mxu0
  %v1298 = vadd.f32 0.0, %v1297
  %v1299 = vpop.f32.mrf.mxu0
  %1300 = vdwg.mxu0
  %vm1301 = vcmp.gt.f32.partialorder %v1156, 0.0
  %vm1302 = vcmp.gt.f32.partialorder %v1158, 0.0
  %vm1303 = vcmp.gt.f32.partialorder %v1227, 0.0
  %vm1304 = vcmp.gt.f32.partialorder %v1229, 0.0
  %vm1305 = vcmp.gt.f32.partialorder %v1298, 0.0
  %v1306 = vmul.f32 %v1156, -0.189
  %v1307 = vmul.f32 %v1158, -0.189
  %v1308 = vmul.f32 %v1227, -0.189
  %v1309 = vmul.f32 %v1229, -0.189
  %v1310 = vmul.f32 %v1298, -0.189
  %v1311 = vsel %vm1301, %v1156, %v1306
  %v1312 = vsel %vm1302, %v1158, %v1307
  %v1313 = vsel %vm1303, %v1227, %v1308
  %v1314 = vsel %vm1304, %v1229, %v1309
  %v1315 = vsel %vm1305, %v1298, %v1310
  %v1317 = vsel %vm355, %v1315, 0
  %1319 = vmatprep.subr.mxu0 0.0
  %1320 = vmatpush1.msra.mxu0 %v30
  %1321 = vmatprep.subr.mxu0 0.0
  %1322 = vmatpush1.msra.mxu0 %v29
  %1323 = vmatprep.subr.mxu0 0.0
  %1324 = vmatpush1.msra.mxu0 %v28
  %1325 = vmatprep.subr.mxu0 0.0
  %1326 = vmatpush1.msra.mxu0 %v27
  %1327 = vmatprep.subr.mxu0 0.0
  %1328 = vmatpush1.msra.mxu0 %v26
  %1329 = vmatprep.subr.mxu0 0.0
  %1330 = vmatpush1.msra.mxu0 %v25
  %1331 = vmatprep.subr.mxu0 0.0
  %1332 = vmatpush1.msra.mxu0 %v24
  %1333 = vmatprep.subr.mxu0 0.0
  %1334 = vmatpush1.msra.mxu0 %v23
  %1335 = vmatprep.subr.mxu0 0.0
  %1336 = vmatpush1.msra.mxu0 %v22
  %1337 = vmatprep.subr.mxu0 0.0
  %1338 = vmatpush1.msra.mxu0 %v21
  %1339 = vmatprep.subr.mxu0 0.0
  %1340 = vmatpush1.msra.mxu0 %v20
  %1341 = vmatprep.subr.mxu0 0.0
  %1342 = vmatpush1.msra.mxu0 %v19
  %1343 = vmatprep.subr.mxu0 0.0
  %1344 = vmatpush1.msra.mxu0 %v18
  %1345 = vmatprep.subr.mxu0 0.0
  %1346 = vmatpush1.msra.mxu0 %v17
  %1347 = vmatprep.subr.mxu0 0.0
  %1348 = vmatpush1.msra.mxu0 %v16
  %1349 = vmatprep.subr.mxu0 0.0
  %1350 = vmatpush1.msra.mxu0 %v15
  %1351 = vmatprep.subr.mxu0 0.0
  %1352 = vmatpush2.msra.mxu0 %v46
  %1353 = vmatprep.subr.mxu0 0.0
  %1354 = vmatpush2.msra.mxu0 %v45
  %1355 = vmatprep.subr.mxu0 0.0
  %1356 = vmatpush2.msra.mxu0 %v44
  %1357 = vmatprep.subr.mxu0 0.0
  %1358 = vmatpush2.msra.mxu0 %v43
  %1359 = vmatprep.subr.mxu0 0.0
  %1360 = vmatpush2.msra.mxu0 %v42
  %1361 = vmatprep.subr.mxu0 0.0
  %1362 = vmatpush2.msra.mxu0 %v41
  %1363 = vmatprep.subr.mxu0 0.0
  %1364 = vmatpush2.msra.mxu0 %v40
  %1365 = vmatprep.subr.mxu0 0.0
  %1366 = vmatpush2.msra.mxu0 %v39
  %1367 = vmatprep.subr.mxu0 0.0
  %1368 = vmatpush2.msra.mxu0 %v38
  %1369 = vmatprep.subr.mxu0 0.0
  %1370 = vmatpush2.msra.mxu0 %v37
  %1371 = vmatprep.subr.mxu0 0.0
  %1372 = vmatpush2.msra.mxu0 %v36
  %1373 = vmatprep.subr.mxu0 0.0
  %1374 = vmatpush2.msra.mxu0 %v35
  %1375 = vmatprep.subr.mxu0 0.0
  %1376 = vmatpush2.msra.mxu0 %v34
  %1377 = vmatprep.subr.mxu0 0.0
  %1378 = vmatpush2.msra.mxu0 %v33
  %1379 = vmatprep.subr.mxu0 0.0
  %1380 = vmatpush2.msra.mxu0 %v32
  %1381 = vmatprep.subr.mxu0 0.0
  %1382 = vmatpush2.msra.mxu0 %v31
  %1383 = vmatprep.mubr.f32.mxu0 %v1312
  %1384 = vmatmul.mubr.f32.gmra.mxu0 %v1311
  %v1385 = vpop.f32.mrf.mxu0
  %v1386 = vadd.f32 0.0, %v1385
  %v1387 = vpop.f32.mrf.mxu0
  %1388 = vdwg.mxu0
  %1389 = vmatprep.subr.mxu0 0.0
  %1390 = vmatpush1.msra.mxu0 %v62
  %1391 = vmatprep.subr.mxu0 0.0
  %1392 = vmatpush1.msra.mxu0 %v61
  %1393 = vmatprep.subr.mxu0 0.0
  %1394 = vmatpush1.msra.mxu0 %v60
  %1395 = vmatprep.subr.mxu0 0.0
  %1396 = vmatpush1.msra.mxu0 %v59
  %1397 = vmatprep.subr.mxu0 0.0
  %1398 = vmatpush1.msra.mxu0 %v58
  %1399 = vmatprep.subr.mxu0 0.0
  %1400 = vmatpush1.msra.mxu0 %v57
  %1401 = vmatprep.subr.mxu0 0.0
  %1402 = vmatpush1.msra.mxu0 %v56
  %1403 = vmatprep.subr.mxu0 0.0
  %1404 = vmatpush1.msra.mxu0 %v55
  %1405 = vmatprep.subr.mxu0 0.0
  %1406 = vmatpush1.msra.mxu0 %v54
  %1407 = vmatprep.subr.mxu0 0.0
  %1408 = vmatpush1.msra.mxu0 %v53
  %1409 = vmatprep.subr.mxu0 0.0
  %1410 = vmatpush1.msra.mxu0 %v52
  %1411 = vmatprep.subr.mxu0 0.0
  %1412 = vmatpush1.msra.mxu0 %v51
  %1413 = vmatprep.subr.mxu0 0.0
  %1414 = vmatpush1.msra.mxu0 %v50
  %1415 = vmatprep.subr.mxu0 0.0
  %1416 = vmatpush1.msra.mxu0 %v49
  %1417 = vmatprep.subr.mxu0 0.0
  %1418 = vmatpush1.msra.mxu0 %v48
  %1419 = vmatprep.subr.mxu0 0.0
  %1420 = vmatpush1.msra.mxu0 %v47
  %1421 = vmatprep.subr.mxu0 0.0
  %1422 = vmatpush2.msra.mxu0 %v78
  %1423 = vmatprep.subr.mxu0 0.0
  %1424 = vmatpush2.msra.mxu0 %v77
  %1425 = vmatprep.subr.mxu0 0.0
  %1426 = vmatpush2.msra.mxu0 %v76
  %1427 = vmatprep.subr.mxu0 0.0
  %1428 = vmatpush2.msra.mxu0 %v75
  %1429 = vmatprep.subr.mxu0 0.0
  %1430 = vmatpush2.msra.mxu0 %v74
  %1431 = vmatprep.subr.mxu0 0.0
  %1432 = vmatpush2.msra.mxu0 %v73
  %1433 = vmatprep.subr.mxu0 0.0
  %1434 = vmatpush2.msra.mxu0 %v72
  %1435 = vmatprep.subr.mxu0 0.0
  %1436 = vmatpush2.msra.mxu0 %v71
  %1437 = vmatprep.subr.mxu0 0.0
  %1438 = vmatpush2.msra.mxu0 %v70
  %1439 = vmatprep.subr.mxu0 0.0
  %1440 = vmatpush2.msra.mxu0 %v69
  %1441 = vmatprep.subr.mxu0 0.0
  %1442 = vmatpush2.msra.mxu0 %v68
  %1443 = vmatprep.subr.mxu0 0.0
  %1444 = vmatpush2.msra.mxu0 %v67
  %1445 = vmatprep.subr.mxu0 0.0
  %1446 = vmatpush2.msra.mxu0 %v66
  %1447 = vmatprep.subr.mxu0 0.0
  %1448 = vmatpush2.msra.mxu0 %v65
  %1449 = vmatprep.subr.mxu0 0.0
  %1450 = vmatpush2.msra.mxu0 %v64
  %1451 = vmatprep.subr.mxu0 0.0
  %1452 = vmatpush2.msra.mxu0 %v63
  %1453 = vmatprep.mubr.f32.mxu0 %v1314
  %1454 = vmatmul.mubr.f32.gmra.mxu0 %v1313
  %v1455 = vpop.f32.mrf.mxu0
  %v1456 = vadd.f32 %v1386, %v1455
  %v1457 = vpop.f32.mrf.mxu0
  %1458 = vdwg.mxu0
  %1459 = vmatprep.subr.mxu0 0.0
  %1460 = vmatpush1.msra.mxu0 0.0
  %1461 = vmatprep.subr.mxu0 0.0
  %1462 = vmatpush1.msra.mxu0 0.0
  %1463 = vmatprep.subr.mxu0 0.0
  %1464 = vmatpush1.msra.mxu0 0.0
  %1465 = vmatprep.subr.mxu0 0.0
  %1466 = vmatpush1.msra.mxu0 0.0
  %1467 = vmatprep.subr.mxu0 0.0
  %1468 = vmatpush1.msra.mxu0 0.0
  %1469 = vmatprep.subr.mxu0 0.0
  %1470 = vmatpush1.msra.mxu0 0.0
  %1471 = vmatprep.subr.mxu0 0.0
  %1472 = vmatpush1.msra.mxu0 0.0
  %1473 = vmatprep.subr.mxu0 0.0
  %1474 = vmatpush1.msra.mxu0 %v361
  %1475 = vmatprep.subr.mxu0 0.0
  %1476 = vmatpush1.msra.mxu0 %v86
  %1477 = vmatprep.subr.mxu0 0.0
  %1478 = vmatpush1.msra.mxu0 %v85
  %1479 = vmatprep.subr.mxu0 0.0
  %1480 = vmatpush1.msra.mxu0 %v84
  %1481 = vmatprep.subr.mxu0 0.0
  %1482 = vmatpush1.msra.mxu0 %v83
  %1483 = vmatprep.subr.mxu0 0.0
  %1484 = vmatpush1.msra.mxu0 %v82
  %1485 = vmatprep.subr.mxu0 0.0
  %1486 = vmatpush1.msra.mxu0 %v81
  %1487 = vmatprep.subr.mxu0 0.0
  %1488 = vmatpush1.msra.mxu0 %v80
  %1489 = vmatprep.subr.mxu0 0.0
  %1490 = vmatpush1.msra.mxu0 %v79
  %1491 = vmatprep.subr.mxu0 0.0
  %1492 = vmatpush2.msra.mxu0 0.0
  %1493 = vmatprep.subr.mxu0 0.0
  %1494 = vmatpush2.msra.mxu0 0.0
  %1495 = vmatprep.subr.mxu0 0.0
  %1496 = vmatpush2.msra.mxu0 0.0
  %1497 = vmatprep.subr.mxu0 0.0
  %1498 = vmatpush2.msra.mxu0 0.0
  %1499 = vmatprep.subr.mxu0 0.0
  %1500 = vmatpush2.msra.mxu0 0.0
  %1501 = vmatprep.subr.mxu0 0.0
  %1502 = vmatpush2.msra.mxu0 0.0
  %1503 = vmatprep.subr.mxu0 0.0
  %1504 = vmatpush2.msra.mxu0 0.0
  %1505 = vmatprep.subr.mxu0 0.0
  %1506 = vmatpush2.msra.mxu0 0.0
  %1507 = vmatprep.subr.mxu0 0.0
  %1508 = vmatpush2.msra.mxu0 0.0
  %1509 = vmatprep.subr.mxu0 0.0
  %1510 = vmatpush2.msra.mxu0 0.0
  %1511 = vmatprep.subr.mxu0 0.0
  %1512 = vmatpush2.msra.mxu0 0.0
  %1513 = vmatprep.subr.mxu0 0.0
  %1514 = vmatpush2.msra.mxu0 0.0
  %1515 = vmatprep.subr.mxu0 0.0
  %1516 = vmatpush2.msra.mxu0 0.0
  %1517 = vmatprep.subr.mxu0 0.0
  %1518 = vmatpush2.msra.mxu0 0.0
  %1519 = vmatprep.subr.mxu0 0.0
  %1520 = vmatpush2.msra.mxu0 0.0
  %1521 = vmatprep.subr.mxu0 0.0
  %1522 = vmatpush2.msra.mxu0 0.0
  %1523 = vmatprep.mubr.f32.mxu0 0.0
  %1524 = vmatmul.mubr.f32.gmra.mxu0 %v1317
  %v1525 = vpop.f32.mrf.mxu0
  %v1526 = vadd.f32 %v1456, %v1525
  %v1527 = vpop.f32.mrf.mxu0
  %1528 = vdwg.mxu0
  %s1529 = scalar_lea.vmem %s3, 16
  %1530 = vst.msk [vmem:[%s1529] sm:$0x3f] %vm573, %v1526
  %s1531 = scalar_lea.vmem %s0, 480
  %v1532 = vld [vmem:[%s1531] sm:$0xff]
  %v1533 = vld [vmem:[%s1531 + $0x8] sm:$0xff]
  %v1534 = vld [vmem:[%s1531 + $0x10] sm:$0xff]
  %v1535 = vld [vmem:[%s1531 + $0x18] sm:$0xff]
  %v1536 = vld [vmem:[%s1531 + $0x20] sm:$0xff]
  %v1537 = vld [vmem:[%s1531 + $0x28] sm:$0xff]
  %v1538 = vld [vmem:[%s1531 + $0x30] sm:$0xff]
  %v1539 = vld [vmem:[%s1531 + $0x38] sm:$0xff]
  %v1540 = vld [vmem:[%s1531 + $0x40] sm:$0xff]
  %v1541 = vld [vmem:[%s1531 + $0x48] sm:$0xff]
  %v1542 = vld [vmem:[%s1531 + $0x50] sm:$0xff]
  %v1543 = vld [vmem:[%s1531 + $0x58] sm:$0xff]
  %v1544 = vld [vmem:[%s1531 + $0x60] sm:$0xff]
  %v1545 = vld [vmem:[%s1531 + $0x68] sm:$0xff]
  %v1546 = vld [vmem:[%s1531 + $0x70] sm:$0xff]
  %v1547 = vld [vmem:[%s1531 + $0x78] sm:$0xf]
  %v1548 = vld [vmem:[%s1531 + $0x80] sm:$0xf]
  %v1549 = vld [vmem:[%s1531 + $0x88] sm:$0xf]
  %v1550 = vld [vmem:[%s1531 + $0x90] sm:$0xf]
  %v1551 = vld [vmem:[%s1531 + $0x98] sm:$0xf]
  %v1553 = vsel %vm112, %v1547, 0
  %v1556 = vsel %vm112, %v1548, 0
  %v1559 = vsel %vm112, %v1549, 0
  %v1562 = vsel %vm112, %v1550, 0
  %v1565 = vsel %vm112, %v1551, 0
  %1567 = vmatprep.subr.mxu0 0.0
  %1568 = vmatpush1.msra.mxu0 0.0
  %1569 = vmatprep.subr.mxu0 0.0
  %1570 = vmatpush1.msra.mxu0 0.0
  %1571 = vmatprep.subr.mxu0 0.0
  %1572 = vmatpush1.msra.mxu0 0.0
  %1573 = vmatprep.subr.mxu0 0.0
  %1574 = vmatpush1.msra.mxu0 0.0
  %1575 = vmatprep.subr.mxu0 0.0
  %1576 = vmatpush1.msra.mxu0 0.0
  %1577 = vmatprep.subr.mxu0 0.0
  %1578 = vmatpush1.msra.mxu0 0.0
  %1579 = vmatprep.subr.mxu0 0.0
  %1580 = vmatpush1.msra.mxu0 0.0
  %1581 = vmatprep.subr.mxu0 0.0
  %1582 = vmatpush1.msra.mxu0 0.0
  %1583 = vmatprep.subr.mxu0 0.0
  %1584 = vmatpush1.msra.mxu0 0.0
  %1585 = vmatprep.subr.mxu0 0.0
  %1586 = vmatpush1.msra.mxu0 0.0
  %1587 = vmatprep.subr.mxu0 0.0
  %1588 = vmatpush1.msra.mxu0 0.0
  %1589 = vmatprep.subr.mxu0 0.0
  %1590 = vmatpush1.msra.mxu0 0.0
  %1591 = vmatprep.subr.mxu0 %v1556
  %1592 = vmatpush1.msra.mxu0 %v1553
  %1593 = vmatprep.subr.mxu0 %v1543
  %1594 = vmatpush1.msra.mxu0 %v1542
  %1595 = vmatprep.subr.mxu0 %v1538
  %1596 = vmatpush1.msra.mxu0 %v1537
  %1597 = vmatprep.subr.mxu0 %v1533
  %1598 = vmatpush1.msra.mxu0 %v1532
  %1599 = vmatprep.subr.mxu0 0.0
  %1600 = vmatpush2.msra.mxu0 0.0
  %1601 = vmatprep.subr.mxu0 0.0
  %1602 = vmatpush2.msra.mxu0 0.0
  %1603 = vmatprep.subr.mxu0 0.0
  %1604 = vmatpush2.msra.mxu0 0.0
  %1605 = vmatprep.subr.mxu0 0.0
  %1606 = vmatpush2.msra.mxu0 0.0
  %1607 = vmatprep.subr.mxu0 0.0
  %1608 = vmatpush2.msra.mxu0 0.0
  %1609 = vmatprep.subr.mxu0 0.0
  %1610 = vmatpush2.msra.mxu0 0.0
  %1611 = vmatprep.subr.mxu0 0.0
  %1612 = vmatpush2.msra.mxu0 0.0
  %1613 = vmatprep.subr.mxu0 0.0
  %1614 = vmatpush2.msra.mxu0 0.0
  %1615 = vmatprep.subr.mxu0 0.0
  %1616 = vmatpush2.msra.mxu0 0.0
  %1617 = vmatprep.subr.mxu0 0.0
  %1618 = vmatpush2.msra.mxu0 0.0
  %1619 = vmatprep.subr.mxu0 0.0
  %1620 = vmatpush2.msra.mxu0 0.0
  %1621 = vmatprep.subr.mxu0 0.0
  %1622 = vmatpush2.msra.mxu0 0.0
  %1623 = vmatprep.subr.mxu0 0.0
  %1624 = vmatpush2.msra.mxu0 0.0
  %1625 = vmatprep.subr.mxu0 0.0
  %1626 = vmatpush2.msra.mxu0 0.0
  %1627 = vmatprep.subr.mxu0 0.0
  %1628 = vmatpush2.msra.mxu0 0.0
  %1629 = vmatprep.subr.mxu0 0.0
  %1630 = vmatpush2.msra.mxu0 0.0
  %1631 = vmatprep.mubr.f32.mxu0 0.0
  %1632 = vmatmul.mubr.f32.gmra.mxu0 %v110
  %v1633 = vpop.f32.mrf.mxu0
  %v1634 = vadd.f32 0.0, %v1633
  %v1635 = vpop.f32.mrf.mxu0
  %v1636 = vadd.f32 0.0, %v1635
  %1637 = vdwg.mxu0
  %1638 = vmatprep.subr.mxu0 0.0
  %1639 = vmatpush1.msra.mxu0 0.0
  %1640 = vmatprep.subr.mxu0 0.0
  %1641 = vmatpush1.msra.mxu0 0.0
  %1642 = vmatprep.subr.mxu0 0.0
  %1643 = vmatpush1.msra.mxu0 0.0
  %1644 = vmatprep.subr.mxu0 0.0
  %1645 = vmatpush1.msra.mxu0 0.0
  %1646 = vmatprep.subr.mxu0 0.0
  %1647 = vmatpush1.msra.mxu0 0.0
  %1648 = vmatprep.subr.mxu0 0.0
  %1649 = vmatpush1.msra.mxu0 0.0
  %1650 = vmatprep.subr.mxu0 0.0
  %1651 = vmatpush1.msra.mxu0 0.0
  %1652 = vmatprep.subr.mxu0 0.0
  %1653 = vmatpush1.msra.mxu0 0.0
  %1654 = vmatprep.subr.mxu0 0.0
  %1655 = vmatpush1.msra.mxu0 0.0
  %1656 = vmatprep.subr.mxu0 0.0
  %1657 = vmatpush1.msra.mxu0 0.0
  %1658 = vmatprep.subr.mxu0 0.0
  %1659 = vmatpush1.msra.mxu0 0.0
  %1660 = vmatprep.subr.mxu0 0.0
  %1661 = vmatpush1.msra.mxu0 0.0
  %1662 = vmatprep.subr.mxu0 %v1562
  %1663 = vmatpush1.msra.mxu0 %v1559
  %1664 = vmatprep.subr.mxu0 %v1545
  %1665 = vmatpush1.msra.mxu0 %v1544
  %1666 = vmatprep.subr.mxu0 %v1540
  %1667 = vmatpush1.msra.mxu0 %v1539
  %1668 = vmatprep.subr.mxu0 %v1535
  %1669 = vmatpush1.msra.mxu0 %v1534
  %1670 = vmatprep.subr.mxu0 0.0
  %1671 = vmatpush2.msra.mxu0 0.0
  %1672 = vmatprep.subr.mxu0 0.0
  %1673 = vmatpush2.msra.mxu0 0.0
  %1674 = vmatprep.subr.mxu0 0.0
  %1675 = vmatpush2.msra.mxu0 0.0
  %1676 = vmatprep.subr.mxu0 0.0
  %1677 = vmatpush2.msra.mxu0 0.0
  %1678 = vmatprep.subr.mxu0 0.0
  %1679 = vmatpush2.msra.mxu0 0.0
  %1680 = vmatprep.subr.mxu0 0.0
  %1681 = vmatpush2.msra.mxu0 0.0
  %1682 = vmatprep.subr.mxu0 0.0
  %1683 = vmatpush2.msra.mxu0 0.0
  %1684 = vmatprep.subr.mxu0 0.0
  %1685 = vmatpush2.msra.mxu0 0.0
  %1686 = vmatprep.subr.mxu0 0.0
  %1687 = vmatpush2.msra.mxu0 0.0
  %1688 = vmatprep.subr.mxu0 0.0
  %1689 = vmatpush2.msra.mxu0 0.0
  %1690 = vmatprep.subr.mxu0 0.0
  %1691 = vmatpush2.msra.mxu0 0.0
  %1692 = vmatprep.subr.mxu0 0.0
  %1693 = vmatpush2.msra.mxu0 0.0
  %1694 = vmatprep.subr.mxu0 0.0
  %1695 = vmatpush2.msra.mxu0 0.0
  %1696 = vmatprep.subr.mxu0 0.0
  %1697 = vmatpush2.msra.mxu0 0.0
  %1698 = vmatprep.subr.mxu0 0.0
  %1699 = vmatpush2.msra.mxu0 0.0
  %1700 = vmatprep.subr.mxu0 0.0
  %1701 = vmatpush2.msra.mxu0 0.0
  %1702 = vmatprep.mubr.f32.mxu0 0.0
  %1703 = vmatmul.mubr.f32.gmra.mxu0 %v110
  %v1704 = vpop.f32.mrf.mxu0
  %v1705 = vadd.f32 0.0, %v1704
  %v1706 = vpop.f32.mrf.mxu0
  %v1707 = vadd.f32 0.0, %v1706
  %1708 = vdwg.mxu0
  %1709 = vmatprep.subr.mxu0 0.0
  %1710 = vmatpush1.msra.mxu0 0.0
  %1711 = vmatprep.subr.mxu0 0.0
  %1712 = vmatpush1.msra.mxu0 0.0
  %1713 = vmatprep.subr.mxu0 0.0
  %1714 = vmatpush1.msra.mxu0 0.0
  %1715 = vmatprep.subr.mxu0 0.0
  %1716 = vmatpush1.msra.mxu0 0.0
  %1717 = vmatprep.subr.mxu0 0.0
  %1718 = vmatpush1.msra.mxu0 0.0
  %1719 = vmatprep.subr.mxu0 0.0
  %1720 = vmatpush1.msra.mxu0 0.0
  %1721 = vmatprep.subr.mxu0 0.0
  %1722 = vmatpush1.msra.mxu0 0.0
  %1723 = vmatprep.subr.mxu0 0.0
  %1724 = vmatpush1.msra.mxu0 0.0
  %1725 = vmatprep.subr.mxu0 0.0
  %1726 = vmatpush1.msra.mxu0 0.0
  %1727 = vmatprep.subr.mxu0 0.0
  %1728 = vmatpush1.msra.mxu0 0.0
  %1729 = vmatprep.subr.mxu0 0.0
  %1730 = vmatpush1.msra.mxu0 0.0
  %1731 = vmatprep.subr.mxu0 0.0
  %1732 = vmatpush1.msra.mxu0 0.0
  %1733 = vmatprep.subr.mxu0 0.0
  %1734 = vmatpush1.msra.mxu0 %v1565
  %1735 = vmatprep.subr.mxu0 0.0
  %1736 = vmatpush1.msra.mxu0 %v1546
  %1737 = vmatprep.subr.mxu0 0.0
  %1738 = vmatpush1.msra.mxu0 %v1541
  %1739 = vmatprep.subr.mxu0 0.0
  %1740 = vmatpush1.msra.mxu0 %v1536
  %1741 = vmatprep.subr.mxu0 0.0
  %1742 = vmatpush2.msra.mxu0 0.0
  %1743 = vmatprep.subr.mxu0 0.0
  %1744 = vmatpush2.msra.mxu0 0.0
  %1745 = vmatprep.subr.mxu0 0.0
  %1746 = vmatpush2.msra.mxu0 0.0
  %1747 = vmatprep.subr.mxu0 0.0
  %1748 = vmatpush2.msra.mxu0 0.0
  %1749 = vmatprep.subr.mxu0 0.0
  %1750 = vmatpush2.msra.mxu0 0.0
  %1751 = vmatprep.subr.mxu0 0.0
  %1752 = vmatpush2.msra.mxu0 0.0
  %1753 = vmatprep.subr.mxu0 0.0
  %1754 = vmatpush2.msra.mxu0 0.0
  %1755 = vmatprep.subr.mxu0 0.0
  %1756 = vmatpush2.msra.mxu0 0.0
  %1757 = vmatprep.subr.mxu0 0.0
  %1758 = vmatpush2.msra.mxu0 0.0
  %1759 = vmatprep.subr.mxu0 0.0
  %1760 = vmatpush2.msra.mxu0 0.0
  %1761 = vmatprep.subr.mxu0 0.0
  %1762 = vmatpush2.msra.mxu0 0.0
  %1763 = vmatprep.subr.mxu0 0.0
  %1764 = vmatpush2.msra.mxu0 0.0
  %1765 = vmatprep.subr.mxu0 0.0
  %1766 = vmatpush2.msra.mxu0 0.0
  %1767 = vmatprep.subr.mxu0 0.0
  %1768 = vmatpush2.msra.mxu0 0.0
  %1769 = vmatprep.subr.mxu0 0.0
  %1770 = vmatpush2.msra.mxu0 0.0
  %1771 = vmatprep.subr.mxu0 0.0
  %1772 = vmatpush2.msra.mxu0 0.0
  %1773 = vmatprep.mubr.f32.mxu0 0.0
  %1774 = vmatmul.mubr.f32.gmra.mxu0 %v110
  %v1775 = vpop.f32.mrf.mxu0
  %v1776 = vadd.f32 0.0, %v1775
  %v1777 = vpop.f32.mrf.mxu0
  %1778 = vdwg.mxu0
  %vm1779 = vcmp.gt.f32.partialorder %v1634, 0.0
  %vm1780 = vcmp.gt.f32.partialorder %v1636, 0.0
  %vm1781 = vcmp.gt.f32.partialorder %v1705, 0.0
  %vm1782 = vcmp.gt.f32.partialorder %v1707, 0.0
  %vm1783 = vcmp.gt.f32.partialorder %v1776, 0.0
  %v1784 = vmul.f32 %v1634, -0.189
  %v1785 = vmul.f32 %v1636, -0.189
  %v1786 = vmul.f32 %v1705, -0.189
  %v1787 = vmul.f32 %v1707, -0.189
  %v1788 = vmul.f32 %v1776, -0.189
  %v1789 = vsel %vm1779, %v1634, %v1784
  %v1790 = vsel %vm1780, %v1636, %v1785
  %v1791 = vsel %vm1781, %v1705, %v1786
  %v1792 = vsel %vm1782, %v1707, %v1787
  %v1793 = vsel %vm1783, %v1776, %v1788
  %v1795 = vsel %vm355, %v1793, 0
  %1797 = vmatprep.subr.mxu0 0.0
  %1798 = vmatpush1.msra.mxu0 %v30
  %1799 = vmatprep.subr.mxu0 0.0
  %1800 = vmatpush1.msra.mxu0 %v29
  %1801 = vmatprep.subr.mxu0 0.0
  %1802 = vmatpush1.msra.mxu0 %v28
  %1803 = vmatprep.subr.mxu0 0.0
  %1804 = vmatpush1.msra.mxu0 %v27
  %1805 = vmatprep.subr.mxu0 0.0
  %1806 = vmatpush1.msra.mxu0 %v26
  %1807 = vmatprep.subr.mxu0 0.0
  %1808 = vmatpush1.msra.mxu0 %v25
  %1809 = vmatprep.subr.mxu0 0.0
  %1810 = vmatpush1.msra.mxu0 %v24
  %1811 = vmatprep.subr.mxu0 0.0
  %1812 = vmatpush1.msra.mxu0 %v23
  %1813 = vmatprep.subr.mxu0 0.0
  %1814 = vmatpush1.msra.mxu0 %v22
  %1815 = vmatprep.subr.mxu0 0.0
  %1816 = vmatpush1.msra.mxu0 %v21
  %1817 = vmatprep.subr.mxu0 0.0
  %1818 = vmatpush1.msra.mxu0 %v20
  %1819 = vmatprep.subr.mxu0 0.0
  %1820 = vmatpush1.msra.mxu0 %v19
  %1821 = vmatprep.subr.mxu0 0.0
  %1822 = vmatpush1.msra.mxu0 %v18
  %1823 = vmatprep.subr.mxu0 0.0
  %1824 = vmatpush1.msra.mxu0 %v17
  %1825 = vmatprep.subr.mxu0 0.0
  %1826 = vmatpush1.msra.mxu0 %v16
  %1827 = vmatprep.subr.mxu0 0.0
  %1828 = vmatpush1.msra.mxu0 %v15
  %1829 = vmatprep.subr.mxu0 0.0
  %1830 = vmatpush2.msra.mxu0 %v46
  %1831 = vmatprep.subr.mxu0 0.0
  %1832 = vmatpush2.msra.mxu0 %v45
  %1833 = vmatprep.subr.mxu0 0.0
  %1834 = vmatpush2.msra.mxu0 %v44
  %1835 = vmatprep.subr.mxu0 0.0
  %1836 = vmatpush2.msra.mxu0 %v43
  %1837 = vmatprep.subr.mxu0 0.0
  %1838 = vmatpush2.msra.mxu0 %v42
  %1839 = vmatprep.subr.mxu0 0.0
  %1840 = vmatpush2.msra.mxu0 %v41
  %1841 = vmatprep.subr.mxu0 0.0
  %1842 = vmatpush2.msra.mxu0 %v40
  %1843 = vmatprep.subr.mxu0 0.0
  %1844 = vmatpush2.msra.mxu0 %v39
  %1845 = vmatprep.subr.mxu0 0.0
  %1846 = vmatpush2.msra.mxu0 %v38
  %1847 = vmatprep.subr.mxu0 0.0
  %1848 = vmatpush2.msra.mxu0 %v37
  %1849 = vmatprep.subr.mxu0 0.0
  %1850 = vmatpush2.msra.mxu0 %v36
  %1851 = vmatprep.subr.mxu0 0.0
  %1852 = vmatpush2.msra.mxu0 %v35
  %1853 = vmatprep.subr.mxu0 0.0
  %1854 = vmatpush2.msra.mxu0 %v34
  %1855 = vmatprep.subr.mxu0 0.0
  %1856 = vmatpush2.msra.mxu0 %v33
  %1857 = vmatprep.subr.mxu0 0.0
  %1858 = vmatpush2.msra.mxu0 %v32
  %1859 = vmatprep.subr.mxu0 0.0
  %1860 = vmatpush2.msra.mxu0 %v31
  %1861 = vmatprep.mubr.f32.mxu0 %v1790
  %1862 = vmatmul.mubr.f32.gmra.mxu0 %v1789
  %v1863 = vpop.f32.mrf.mxu0
  %v1864 = vadd.f32 0.0, %v1863
  %v1865 = vpop.f32.mrf.mxu0
  %1866 = vdwg.mxu0
  %1867 = vmatprep.subr.mxu0 0.0
  %1868 = vmatpush1.msra.mxu0 %v62
  %1869 = vmatprep.subr.mxu0 0.0
  %1870 = vmatpush1.msra.mxu0 %v61
  %1871 = vmatprep.subr.mxu0 0.0
  %1872 = vmatpush1.msra.mxu0 %v60
  %1873 = vmatprep.subr.mxu0 0.0
  %1874 = vmatpush1.msra.mxu0 %v59
  %1875 = vmatprep.subr.mxu0 0.0
  %1876 = vmatpush1.msra.mxu0 %v58
  %1877 = vmatprep.subr.mxu0 0.0
  %1878 = vmatpush1.msra.mxu0 %v57
  %1879 = vmatprep.subr.mxu0 0.0
  %1880 = vmatpush1.msra.mxu0 %v56
  %1881 = vmatprep.subr.mxu0 0.0
  %1882 = vmatpush1.msra.mxu0 %v55
  %1883 = vmatprep.subr.mxu0 0.0
  %1884 = vmatpush1.msra.mxu0 %v54
  %1885 = vmatprep.subr.mxu0 0.0
  %1886 = vmatpush1.msra.mxu0 %v53
  %1887 = vmatprep.subr.mxu0 0.0
  %1888 = vmatpush1.msra.mxu0 %v52
  %1889 = vmatprep.subr.mxu0 0.0
  %1890 = vmatpush1.msra.mxu0 %v51
  %1891 = vmatprep.subr.mxu0 0.0
  %1892 = vmatpush1.msra.mxu0 %v50
  %1893 = vmatprep.subr.mxu0 0.0
  %1894 = vmatpush1.msra.mxu0 %v49
  %1895 = vmatprep.subr.mxu0 0.0
  %1896 = vmatpush1.msra.mxu0 %v48
  %1897 = vmatprep.subr.mxu0 0.0
  %1898 = vmatpush1.msra.mxu0 %v47
  %1899 = vmatprep.subr.mxu0 0.0
  %1900 = vmatpush2.msra.mxu0 %v78
  %1901 = vmatprep.subr.mxu0 0.0
  %1902 = vmatpush2.msra.mxu0 %v77
  %1903 = vmatprep.subr.mxu0 0.0
  %1904 = vmatpush2.msra.mxu0 %v76
  %1905 = vmatprep.subr.mxu0 0.0
  %1906 = vmatpush2.msra.mxu0 %v75
  %1907 = vmatprep.subr.mxu0 0.0
  %1908 = vmatpush2.msra.mxu0 %v74
  %1909 = vmatprep.subr.mxu0 0.0
  %1910 = vmatpush2.msra.mxu0 %v73
  %1911 = vmatprep.subr.mxu0 0.0
  %1912 = vmatpush2.msra.mxu0 %v72
  %1913 = vmatprep.subr.mxu0 0.0
  %1914 = vmatpush2.msra.mxu0 %v71
  %1915 = vmatprep.subr.mxu0 0.0
  %1916 = vmatpush2.msra.mxu0 %v70
  %1917 = vmatprep.subr.mxu0 0.0
  %1918 = vmatpush2.msra.mxu0 %v69
  %1919 = vmatprep.subr.mxu0 0.0
  %1920 = vmatpush2.msra.mxu0 %v68
  %1921 = vmatprep.subr.mxu0 0.0
  %1922 = vmatpush2.msra.mxu0 %v67
  %1923 = vmatprep.subr.mxu0 0.0
  %1924 = vmatpush2.msra.mxu0 %v66
  %1925 = vmatprep.subr.mxu0 0.0
  %1926 = vmatpush2.msra.mxu0 %v65
  %1927 = vmatprep.subr.mxu0 0.0
  %1928 = vmatpush2.msra.mxu0 %v64
  %1929 = vmatprep.subr.mxu0 0.0
  %1930 = vmatpush2.msra.mxu0 %v63
  %1931 = vmatprep.mubr.f32.mxu0 %v1792
  %1932 = vmatmul.mubr.f32.gmra.mxu0 %v1791
  %v1933 = vpop.f32.mrf.mxu0
  %v1934 = vadd.f32 %v1864, %v1933
  %v1935 = vpop.f32.mrf.mxu0
  %1936 = vdwg.mxu0
  %1937 = vmatprep.subr.mxu0 0.0
  %1938 = vmatpush1.msra.mxu0 0.0
  %1939 = vmatprep.subr.mxu0 0.0
  %1940 = vmatpush1.msra.mxu0 0.0
  %1941 = vmatprep.subr.mxu0 0.0
  %1942 = vmatpush1.msra.mxu0 0.0
  %1943 = vmatprep.subr.mxu0 0.0
  %1944 = vmatpush1.msra.mxu0 0.0
  %1945 = vmatprep.subr.mxu0 0.0
  %1946 = vmatpush1.msra.mxu0 0.0
  %1947 = vmatprep.subr.mxu0 0.0
  %1948 = vmatpush1.msra.mxu0 0.0
  %1949 = vmatprep.subr.mxu0 0.0
  %1950 = vmatpush1.msra.mxu0 0.0
  %1951 = vmatprep.subr.mxu0 0.0
  %1952 = vmatpush1.msra.mxu0 %v361
  %1953 = vmatprep.subr.mxu0 0.0
  %1954 = vmatpush1.msra.mxu0 %v86
  %1955 = vmatprep.subr.mxu0 0.0
  %1956 = vmatpush1.msra.mxu0 %v85
  %1957 = vmatprep.subr.mxu0 0.0
  %1958 = vmatpush1.msra.mxu0 %v84
  %1959 = vmatprep.subr.mxu0 0.0
  %1960 = vmatpush1.msra.mxu0 %v83
  %1961 = vmatprep.subr.mxu0 0.0
  %1962 = vmatpush1.msra.mxu0 %v82
  %1963 = vmatprep.subr.mxu0 0.0
  %1964 = vmatpush1.msra.mxu0 %v81
  %1965 = vmatprep.subr.mxu0 0.0
  %1966 = vmatpush1.msra.mxu0 %v80
  %1967 = vmatprep.subr.mxu0 0.0
  %1968 = vmatpush1.msra.mxu0 %v79
  %1969 = vmatprep.subr.mxu0 0.0
  %1970 = vmatpush2.msra.mxu0 0.0
  %1971 = vmatprep.subr.mxu0 0.0
  %1972 = vmatpush2.msra.mxu0 0.0
  %1973 = vmatprep.subr.mxu0 0.0
  %1974 = vmatpush2.msra.mxu0 0.0
  %1975 = vmatprep.subr.mxu0 0.0
  %1976 = vmatpush2.msra.mxu0 0.0
  %1977 = vmatprep.subr.mxu0 0.0
  %1978 = vmatpush2.msra.mxu0 0.0
  %1979 = vmatprep.subr.mxu0 0.0
  %1980 = vmatpush2.msra.mxu0 0.0
  %1981 = vmatprep.subr.mxu0 0.0
  %1982 = vmatpush2.msra.mxu0 0.0
  %1983 = vmatprep.subr.mxu0 0.0
  %1984 = vmatpush2.msra.mxu0 0.0
  %1985 = vmatprep.subr.mxu0 0.0
  %1986 = vmatpush2.msra.mxu0 0.0
  %1987 = vmatprep.subr.mxu0 0.0
  %1988 = vmatpush2.msra.mxu0 0.0
  %1989 = vmatprep.subr.mxu0 0.0
  %1990 = vmatpush2.msra.mxu0 0.0
  %1991 = vmatprep.subr.mxu0 0.0
  %1992 = vmatpush2.msra.mxu0 0.0
  %1993 = vmatprep.subr.mxu0 0.0
  %1994 = vmatpush2.msra.mxu0 0.0
  %1995 = vmatprep.subr.mxu0 0.0
  %1996 = vmatpush2.msra.mxu0 0.0
  %1997 = vmatprep.subr.mxu0 0.0
  %1998 = vmatpush2.msra.mxu0 0.0
  %1999 = vmatprep.subr.mxu0 0.0
  %2000 = vmatpush2.msra.mxu0 0.0
  %2001 = vmatprep.mubr.f32.mxu0 0.0
  %2002 = vmatmul.mubr.f32.gmra.mxu0 %v1795
  %v2003 = vpop.f32.mrf.mxu0
  %v2004 = vadd.f32 %v1934, %v2003
  %v2005 = vpop.f32.mrf.mxu0
  %2006 = vdwg.mxu0
  %s2007 = scalar_lea.vmem %s3, 24
  %2008 = vst.msk [vmem:[%s2007] sm:$0x3f] %vm573, %v2004
  // Predicated region
  $region14: #{model_forward.1} parent=0 // pred_check
    _
  $region15: #{model_forward.1} parent=0 // pred_check_branch
    %2010 = sbr.rel (0) target = $region17
  $region16: #{model_forward.1} parent=0 // pred_region
    _
  $region17: #{model_forward.1} parent=0 // pred_fallthru
    _
  // Predicated region
  $region18: #{model_forward.1} parent=0 // pred_check
    _
  $region19: #{model_forward.1} parent=0 // pred_check_branch
    %2012 = sbr.rel (0) target = $region21
  $region20: #{model_forward.1} parent=0 // pred_region
    _
  $region21: #{model_forward.1} parent=0 // pred_fallthru
    _

</llo_original>
